<compile_context>
chip_gen: v7x
topology: tpu7x:2x2x1
jax: 0.10.0
libtpu: 0.0.40
codegen_flags: <defaults>
</compile_context>

<pallas_src>
import functools

import jax
import jax.numpy as jnp
import numpy as np
from jax.experimental import pallas as pl
from jax.experimental.pallas import tpu as pltpu


# ----------------------------------------------------------------------------
# Fused Pallas kernel (one batch element per grid step; everything in VMEM)
# ----------------------------------------------------------------------------
def _fused_varcnn_kernel(x_ref, w1_ref, s1_ref, t1_ref,
                         w2_ref, s2_ref, t2_ref,
                         fw1_ref, fb1_ref, fw2_ref, fb2_ref,
                         o_ref,
                         tap1_scr, y1_scr, tap2_scr, y2_scr, flat_scr,
                         *, seq_len):
    """VarCNN forward (eval mode) for one batch element.

    x_ref  : (1, L, Cin)   f32   NLC input tile (channels on lanes)
    w{1,2} : (3*Cin, Cout) bf16  conv weights, 3 taps stacked along K
    s, t   : (1, Cout)     f32   folded BN scale / shift (conv bias folded into t)
    fw1    : (L4*C2, H)    bf16  fc1 weight, rows in the kernel's l-major flatten order
    fb1    : (1, H)        f32
    fw2    : (H, NCp)      bf16  fc2 weight, classes padded to a 128-lane multiple
    fb2    : (1, NCp)      f32
    o_ref  : (1, 1, NCp)   f32
    """

    def conv_bn_lrelu_pool(x, w_ref_, sc, sh, n, cin, tap_scr, y_scr):
        # Conv1d(k=3, padding=1) as ONE K=3*Cin matmul: assemble [x_prev | x | x_next]
        # (neighbour rows via XLU sublane roll, zeroed at the sequence ends) in VMEM.
        row = jax.lax.broadcasted_iota(jnp.int32, (n, 1), 0)
        tap_scr[:, 0:cin] = jnp.where(row == 0, 0.0,
                                      pltpu.roll(x, shift=1, axis=0))
        tap_scr[:, cin:2 * cin] = x
        tap_scr[:, 2 * cin:3 * cin] = jnp.where(row == n - 1, 0.0,
                                                pltpu.roll(x, shift=n - 1, axis=0))
        y = jnp.dot(tap_scr[...].astype(jnp.bfloat16), w_ref_[...],
                    preferred_element_type=jnp.float32)
        y = y * sc + sh                      # BatchNorm1d (eval); conv bias folded in
        y = jnp.where(y > 0, y, 0.1 * y)     # LeakyReLU(0.1)
        # AvgPool1d(kernel=2, stride=2): y[r] + y[r+1] in registers (XLU roll + VPU
        # add), one store, one stride-2 sublane read of the even rows.
        y_scr[...] = y + pltpu.roll(y, shift=n - 1, axis=0)
        return 0.5 * y_scr[pl.ds(0, n // 2, stride=2), :]

    x = x_ref[0]                                                    # (L, Cin) f32
    cin = x.shape[1]
    c1 = w1_ref.shape[1]
    c2 = w2_ref.shape[1]

    h1 = conv_bn_lrelu_pool(x, w1_ref, s1_ref[...], t1_ref[...],
                            seq_len, cin, tap1_scr, y1_scr)         # (L/2, C1)
    h2 = conv_bn_lrelu_pool(h1, w2_ref, s2_ref[...], t2_ref[...],
                            seq_len // 2, c1, tap2_scr, y2_scr)     # (L/4, C2)

    # torch's channel-major x.view(B, -1): fw1 rows were pre-permuted on the host to
    # the kernel's l-major order, so we just pack the L/4 pooled rows into one
    # lane-dense (1, L4*C2) vector (128-aligned stores) and run fc1 as ONE matmul.
    l4 = seq_len // 4
    for l in range(l4):                                             # small static unroll
        flat_scr[:, l * c2:(l + 1) * c2] = h2[l:l + 1, :]
    z = jnp.dot(flat_scr[...].astype(jnp.bfloat16), fw1_ref[...],
                preferred_element_type=jnp.float32) + fb1_ref[...]
    z = jnp.where(z > 0, z, 0.1 * z)                                # LeakyReLU(0.1)
    # Dropout(0.3): identity in eval mode.
    out = jnp.dot(z.astype(jnp.bfloat16), fw2_ref[...],
                  preferred_element_type=jnp.float32) + fb2_ref[...]
    o_ref[...] = jnp.reshape(out, o_ref.shape)


# ----------------------------------------------------------------------------
# Wrapper around pallas_call
# ----------------------------------------------------------------------------
def _resident_spec(shape):
    zeros = (0,) * len(shape)
    return pl.BlockSpec(shape, lambda i, _z=zeros: _z)   # block 0 forever -> stays in VMEM


@functools.partial(jax.jit, static_argnums=2)
def var_cnn_forward(x_ncl, kp, num_classes):
    """x_ncl: (B, C_in, L) exactly like the PyTorch module's input (eval mode)."""
    B, Cin, L = x_ncl.shape
    assert L % 4 == 0
    C1 = kp["w1"].shape[1]
    C2 = kp["w2"].shape[1]
    NCp = kp["fw2"].shape[1]
    L4 = L // 4
    assert kp["fw1"].shape[0] == L4 * C2

    # NCL -> NLC boundary glue (channels land on the lane axis).
    x_nlc = jnp.transpose(x_ncl, (0, 2, 1))              # (B, L, Cin)

    args = (x_nlc, kp["w1"], kp["s1"], kp["t1"], kp["w2"], kp["s2"], kp["t2"],
            kp["fw1"], kp["fb1"], kp["fw2"], kp["fb2"])

    in_specs = [pl.BlockSpec((1, L, Cin), lambda i: (i, 0, 0))] + \
               [_resident_spec(a.shape) for a in args[1:]]

    kernel = functools.partial(_fused_varcnn_kernel, seq_len=L)
    out = pl.pallas_call(
        kernel,
        out_shape=jax.ShapeDtypeStruct((B, 1, NCp), jnp.float32),
        grid=(B,),
        in_specs=in_specs,
        out_specs=pl.BlockSpec((1, 1, NCp), lambda i: (i, 0, 0)),
        scratch_shapes=[
            pltpu.VMEM((L, 3 * Cin), jnp.float32),        # stage-1 stacked taps
            pltpu.VMEM((L, C1), jnp.float32),             # stage-1 pre-pool
            pltpu.VMEM((L // 2, 3 * C1), jnp.float32),    # stage-2 stacked taps
            pltpu.VMEM((L // 2, C2), jnp.float32),        # stage-2 pre-pool
            pltpu.VMEM((1, L4 * C2), jnp.float32),        # lane-dense fc1 input
        ],
        compiler_params=pltpu.CompilerParams(
            dimension_semantics=("parallel",),
            vmem_limit_bytes=32 * 1024 * 1024,            # explicit (v5e default is 16 MiB)
        ),
    )(*args)
    return out[:, 0, :num_classes]


# ----------------------------------------------------------------------------
# One-time host-side parameter folding (eval-mode constants, bf16 matmul operands)
# ----------------------------------------------------------------------------
def fold_params(params):
    f32, bf16 = jnp.float32, jnp.bfloat16
    _, Cin, C1 = params["w1"].shape
    _, _, C2 = params["w2"].shape
    F, H = params["fw1"].shape
    L4 = F // C2
    NC = params["fw2"].shape[1]
    NCp = max(128, ((NC + 127) // 128) * 128)             # lane-dense output
    # Fold conv bias into BN shift: scale*(y + b) + shift = scale*y + (scale*b + shift)
    t1 = params["s1"] * params["b1"] + params["t1"]
    t2 = params["s2"] * params["b2"] + params["t2"]
    # fc1 rows: torch flatten index is c*L4 + l; kernel flatten index is l*C2 + c.
    fw1_flat = jnp.transpose(params["fw1"].reshape(C2, L4, H), (1, 0, 2)).reshape(L4 * C2, H)
    fw2p = jnp.zeros((H, NCp), f32).at[:, :NC].set(params["fw2"])
    fb2p = jnp.zeros((1, NCp), f32).at[:, :NC].set(params["fb2"])
    return {
        # conv weights stacked along K: rows [k*Cin:(k+1)*Cin] = tap k
        "w1": params["w1"].reshape(3 * Cin, C1).astype(bf16),
        "s1": params["s1"].astype(f32), "t1": t1.astype(f32),
        "w2": params["w2"].reshape(3 * C1, C2).astype(bf16),
        "s2": params["s2"].astype(f32), "t2": t2.astype(f32),
        "fw1": fw1_flat.astype(bf16), "fb1": params["fb1"].astype(f32),
        "fw2": fw2p.astype(bf16), "fb2": fb2p.astype(f32),
    }


# ----------------------------------------------------------------------------
# Pure-JAX reference (NCL, mirrors the PyTorch forward in eval mode, f32)
# ----------------------------------------------------------------------------
def reference_forward(x_ncl, params):
    hi = jax.lax.Precision.HIGHEST

    def stage(x, w, b, sc, sh):                               # x: (B, C, L)
        B, Cin, L = x.shape
        xp = jnp.pad(x, ((0, 0), (0, 0), (1, 1)))
        taps = [xp[:, :, k:k + L] for k in range(3)]          # tap k sees x[l + k - 1]
        y = sum(jnp.einsum("bcl,cd->bdl", taps[k], w[k], precision=hi)
                for k in range(3))
        y = y + b[0][None, :, None]
        y = y * sc[0][None, :, None] + sh[0][None, :, None]
        y = jnp.where(y > 0, y, 0.1 * y)
        return y.reshape(B, y.shape[1], L // 2, 2).mean(-1)

    h = stage(x_ncl, params["w1"], params["b1"], params["s1"], params["t1"])
    h = stage(h, params["w2"], params["b2"], params["s2"], params["t2"])
    flat = h.reshape(h.shape[0], -1)
    z = jnp.dot(flat, params["fw1"], precision=hi) + params["fb1"][0]
    z = jnp.where(z > 0, z, 0.1 * z)
    return jnp.dot(z, params["fw2"], precision=hi) + params["fb2"][0]


# ----------------------------------------------------------------------------
# Deterministic parameter init (synthetic, not a checkpoint; torch conventions)
# ----------------------------------------------------------------------------
def init_params(key, input_channels, num_classes):
    C1, C2, H = 64, 128, 256
    F = C2 * (input_channels // 4)
    eps = 1e-5
    ks = jax.random.split(key, 12)

    def bn(kg, kb, c):
        gamma = 1.0 + 0.1 * jax.random.normal(kg, (c,), jnp.float32)
        beta = 0.1 * jax.random.normal(kb, (c,), jnp.float32)
        scale = gamma / jnp.sqrt(1.0 + eps)        # running_var = 1
        shift = beta                               # running_mean = 0
        return scale.reshape(1, c), shift.reshape(1, c)

    s1, t1 = bn(ks[2], ks[3], C1)
    s2, t2 = bn(ks[6], ks[7], C2)
    return {
        # conv weights stored as (3, Cin, Cout): w[k] = W_torch[:, :, k].T
        "w1": 0.1 * jax.random.normal(ks[0], (3, input_channels, C1), jnp.float32),
        "b1": 0.1 * jax.random.normal(ks[1], (1, C1), jnp.float32),
        "s1": s1, "t1": t1,
        "w2": 0.1 * jax.random.normal(ks[4], (3, C1, C2), jnp.float32),
        "b2": 0.1 * jax.random.normal(ks[5], (1, C2), jnp.float32),
        "s2": s2, "t2": t2,
        "fw1": 0.05 * jax.random.normal(ks[8], (F, H), jnp.float32),
        "fb1": 0.05 * jax.random.normal(ks[9], (1, H), jnp.float32),
        "fw2": 0.05 * jax.random.normal(ks[10], (H, num_classes), jnp.float32),
        "fb2": 0.05 * jax.random.normal(ks[11], (1, num_classes), jnp.float32),
    }


if __name__ == "__main__":
    B = 2
    input_channels = 16     # the module's fc1 shape implies seq_len == input_channels
    seq_len = 16
    num_classes = 8

    key = jax.random.PRNGKey(0)
    kx, kparam = jax.random.split(key)
    x = jax.random.normal(kx, (B, input_channels, seq_len), jnp.float32)  # NCL
    params = init_params(kparam, input_channels, num_classes)
    kparams = fold_params(params)

    out = var_cnn_forward(x, kparams, num_classes)
    out = jax.block_until_ready(out)

    ref = reference_forward(x, params)
    assert out.shape == (B, num_classes)
    # bf16 MXU operands vs. f32 reference -> slightly relaxed tolerance.
    np.testing.assert_allclose(np.asarray(out), np.asarray(ref), rtol=3e-2, atol=3e-2)

    print("KERNEL_OK")
</pallas_src>

<mosaic_0001>
module attributes {stable_mosaic.version = 11 : i64} {
  func.func @_fused_varcnn_kernel(%arg0: i32, %arg1: memref<1x16x16xf32, #tpu.memory_space<vmem>>, %arg2: memref<48x64xbf16, #tpu.memory_space<vmem>>, %arg3: memref<1x64xf32, #tpu.memory_space<vmem>>, %arg4: memref<1x64xf32, #tpu.memory_space<vmem>>, %arg5: memref<192x128xbf16, #tpu.memory_space<vmem>>, %arg6: memref<1x128xf32, #tpu.memory_space<vmem>>, %arg7: memref<1x128xf32, #tpu.memory_space<vmem>>, %arg8: memref<512x256xbf16, #tpu.memory_space<vmem>>, %arg9: memref<1x256xf32, #tpu.memory_space<vmem>>, %arg10: memref<256x128xbf16, #tpu.memory_space<vmem>>, %arg11: memref<1x128xf32, #tpu.memory_space<vmem>>, %arg12: memref<1x1x128xf32, #tpu.memory_space<vmem>>, %arg13: memref<16x48xf32, #tpu.memory_space<vmem>>, %arg14: memref<16x64xf32, #tpu.memory_space<vmem>>, %arg15: memref<8x192xf32, #tpu.memory_space<vmem>>, %arg16: memref<8x128xf32, #tpu.memory_space<vmem>>, %arg17: memref<1x512xf32, #tpu.memory_space<vmem>>) attributes {dimension_semantics = [#tpu.dimension_semantics<parallel>], iteration_bounds = array<i64: 2>, scalar_prefetch = 0 : i64, scratch_operands = 5 : i64, tpu.core_type = #tpu.core_type<tc>, window_params = [{transform_indices = @transform_0, window_bounds = array<i64: 1, 16, 16>}, {pipeline_mode = #tpu.pipeline_mode<synchronous>, transform_indices = @transform_1, window_bounds = array<i64: 48, 64>}, {pipeline_mode = #tpu.pipeline_mode<synchronous>, transform_indices = @transform_2, window_bounds = array<i64: 1, 64>}, {pipeline_mode = #tpu.pipeline_mode<synchronous>, transform_indices = @transform_3, window_bounds = array<i64: 1, 64>}, {pipeline_mode = #tpu.pipeline_mode<synchronous>, transform_indices = @transform_4, window_bounds = array<i64: 192, 128>}, {pipeline_mode = #tpu.pipeline_mode<synchronous>, transform_indices = @transform_5, window_bounds = array<i64: 1, 128>}, {pipeline_mode = #tpu.pipeline_mode<synchronous>, transform_indices = @transform_6, window_bounds = array<i64: 1, 128>}, {pipeline_mode = #tpu.pipeline_mode<synchronous>, transform_indices = @transform_7, window_bounds = array<i64: 512, 256>}, {pipeline_mode = #tpu.pipeline_mode<synchronous>, transform_indices = @transform_8, window_bounds = array<i64: 1, 256>}, {pipeline_mode = #tpu.pipeline_mode<synchronous>, transform_indices = @transform_9, window_bounds = array<i64: 256, 128>}, {pipeline_mode = #tpu.pipeline_mode<synchronous>, transform_indices = @transform_10, window_bounds = array<i64: 1, 128>}, {transform_indices = @transform_11, window_bounds = array<i64: 1, 1, 128>}]} {
    %c0 = arith.constant 0 : index
    %c0_0 = arith.constant 0 : index
    %c0_1 = arith.constant 0 : index
    %0 = vector.load %arg1[%c0, %c0_0, %c0_1] : memref<1x16x16xf32, #tpu.memory_space<vmem>>, vector<1x16x16xf32>
    %1 = vector.shape_cast %0 : vector<1x16x16xf32> to vector<16x16xf32>
    %c0_2 = arith.constant 0 : index
    %c0_3 = arith.constant 0 : index
    %2 = vector.load %arg3[%c0_2, %c0_3] : memref<1x64xf32, #tpu.memory_space<vmem>>, vector<1x64xf32>
    %c0_4 = arith.constant 0 : index
    %c0_5 = arith.constant 0 : index
    %3 = vector.load %arg4[%c0_4, %c0_5] : memref<1x64xf32, #tpu.memory_space<vmem>>, vector<1x64xf32>
    %4 = tpu.iota {dimensions = array<i32: 0>} : vector<16x1xi32>
    %c0_i32 = arith.constant 0 : i32
    %5 = vector.broadcast %c0_i32 : i32 to vector<16x1xi32>
    %6 = arith.cmpi eq, %4, %5 : vector<16x1xi32>
    %c1_i32 = arith.constant 1 : i32
    %7 = tpu.dynamic_rotate %1 by %c1_i32 dim 0 : vector<16x16xf32>, i32 -> vector<16x16xf32>
    %cst = arith.constant 0.000000e+00 : f32
    %8 = vector.shape_cast %6 : vector<16x1xi1> to vector<16x1xi1>
    %9 = vector.broadcast %8 : vector<16x1xi1> to vector<16x16xi1>
    %10 = vector.broadcast %cst : f32 to vector<16x16xf32>
    %11 = arith.select %9, %10, %7 : vector<16x16xi1>, vector<16x16xf32>
    %c0_6 = arith.constant 0 : index
    %c0_7 = arith.constant 0 : index
    %12 = vector.load %arg13[%c0_6, %c0_7] : memref<16x48xf32, #tpu.memory_space<vmem>>, vector<16x16xf32>
    tpu.vector_store %arg13[%c0_6, %c0_7], %11 {strides = array<i32>} : memref<16x48xf32, #tpu.memory_space<vmem>>, vector<16x16xf32>,
    %c0_8 = arith.constant 0 : index
    %c16 = arith.constant 16 : index
    %13 = vector.load %arg13[%c0_8, %c16] : memref<16x48xf32, #tpu.memory_space<vmem>>, vector<16x16xf32>
    tpu.vector_store %arg13[%c0_8, %c16], %1 {strides = array<i32>} : memref<16x48xf32, #tpu.memory_space<vmem>>, vector<16x16xf32>,
    %c15_i32 = arith.constant 15 : i32
    %14 = vector.broadcast %c15_i32 : i32 to vector<16x1xi32>
    %15 = arith.cmpi eq, %4, %14 : vector<16x1xi32>
    %c15_i32_9 = arith.constant 15 : i32
    %16 = tpu.dynamic_rotate %1 by %c15_i32_9 dim 0 : vector<16x16xf32>, i32 -> vector<16x16xf32>
    %cst_10 = arith.constant 0.000000e+00 : f32
    %17 = vector.shape_cast %15 : vector<16x1xi1> to vector<16x1xi1>
    %18 = vector.broadcast %17 : vector<16x1xi1> to vector<16x16xi1>
    %19 = vector.broadcast %cst_10 : f32 to vector<16x16xf32>
    %20 = arith.select %18, %19, %16 : vector<16x16xi1>, vector<16x16xf32>
    %c0_11 = arith.constant 0 : index
    %c32 = arith.constant 32 : index
    %21 = vector.load %arg13[%c0_11, %c32] : memref<16x48xf32, #tpu.memory_space<vmem>>, vector<16x16xf32>
    tpu.vector_store %arg13[%c0_11, %c32], %20 {strides = array<i32>} : memref<16x48xf32, #tpu.memory_space<vmem>>, vector<16x16xf32>,
    %c0_12 = arith.constant 0 : index
    %c0_13 = arith.constant 0 : index
    %22 = vector.load %arg13[%c0_12, %c0_13] : memref<16x48xf32, #tpu.memory_space<vmem>>, vector<16x48xf32>
    %23 = arith.truncf %22 : vector<16x48xf32> to vector<16x48xbf16>
    %c0_14 = arith.constant 0 : index
    %c0_15 = arith.constant 0 : index
    %24 = vector.load %arg2[%c0_14, %c0_15] : memref<48x64xbf16, #tpu.memory_space<vmem>>, vector<48x64xbf16>
    %cst_16 = arith.constant dense<0.000000e+00> : vector<16x64xf32>
    %25 = tpu.matmul %23, %24, %cst_16 {dimension_numbers = #tpu.dot_dimension_numbers<[1], [0], [0], [1], [0, 0, 1, 1], [], []>} : vector<16x48xbf16>, vector<48x64xbf16>, vector<16x64xf32> -> vector<16x64xf32>
    %26 = vector.broadcast %2 : vector<1x64xf32> to vector<16x64xf32>
    %27 = arith.mulf %25, %26 : vector<16x64xf32>
    %28 = vector.broadcast %3 : vector<1x64xf32> to vector<16x64xf32>
    %29 = arith.addf %27, %28 : vector<16x64xf32>
    %cst_17 = arith.constant 0.000000e+00 : f32
    %30 = vector.broadcast %cst_17 : f32 to vector<16x64xf32>
    %31 = arith.cmpf ogt, %29, %30 : vector<16x64xf32>
    %cst_18 = arith.constant 1.000000e-01 : f32
    %32 = vector.broadcast %cst_18 : f32 to vector<16x64xf32>
    %33 = arith.mulf %32, %29 : vector<16x64xf32>
    %34 = arith.select %31, %29, %33 : vector<16x64xi1>, vector<16x64xf32>
    %c15_i32_19 = arith.constant 15 : i32
    %35 = tpu.dynamic_rotate %34 by %c15_i32_19 dim 0 : vector<16x64xf32>, i32 -> vector<16x64xf32>
    %36 = arith.addf %34, %35 : vector<16x64xf32>
    %c0_20 = arith.constant 0 : index
    %c0_21 = arith.constant 0 : index
    %37 = vector.load %arg14[%c0_20, %c0_21] : memref<16x64xf32, #tpu.memory_space<vmem>>, vector<16x64xf32>
    tpu.vector_store %arg14[%c0_20, %c0_21], %36 {strides = array<i32>} : memref<16x64xf32, #tpu.memory_space<vmem>>, vector<16x64xf32>,
    %c0_22 = arith.constant 0 : index
    %c0_23 = arith.constant 0 : index
    %38 = tpu.strided_load %arg14[%c0_22, %c0_23] {strides = array<i32: 2, 1>} : memref<16x64xf32, #tpu.memory_space<vmem>>, vector<8x64xf32>
    %cst_24 = arith.constant 5.000000e-01 : f32
    %39 = vector.broadcast %cst_24 : f32 to vector<8x64xf32>
    %40 = arith.mulf %39, %38 : vector<8x64xf32>
    %c0_25 = arith.constant 0 : index
    %c0_26 = arith.constant 0 : index
    %41 = vector.load %arg6[%c0_25, %c0_26] : memref<1x128xf32, #tpu.memory_space<vmem>>, vector<1x128xf32>
    %c0_27 = arith.constant 0 : index
    %c0_28 = arith.constant 0 : index
    %42 = vector.load %arg7[%c0_27, %c0_28] : memref<1x128xf32, #tpu.memory_space<vmem>>, vector<1x128xf32>
    %43 = tpu.iota {dimensions = array<i32: 0>} : vector<8x1xi32>
    %c0_i32_29 = arith.constant 0 : i32
    %44 = vector.broadcast %c0_i32_29 : i32 to vector<8x1xi32>
    %45 = arith.cmpi eq, %43, %44 : vector<8x1xi32>
    %c1_i32_30 = arith.constant 1 : i32
    %46 = tpu.dynamic_rotate %40 by %c1_i32_30 dim 0 : vector<8x64xf32>, i32 -> vector<8x64xf32>
    %cst_31 = arith.constant 0.000000e+00 : f32
    %47 = vector.shape_cast %45 : vector<8x1xi1> to vector<8x1xi1>
    %48 = vector.broadcast %47 : vector<8x1xi1> to vector<8x64xi1>
    %49 = vector.broadcast %cst_31 : f32 to vector<8x64xf32>
    %50 = arith.select %48, %49, %46 : vector<8x64xi1>, vector<8x64xf32>
    %c0_32 = arith.constant 0 : index
    %c0_33 = arith.constant 0 : index
    %51 = vector.load %arg15[%c0_32, %c0_33] : memref<8x192xf32, #tpu.memory_space<vmem>>, vector<8x64xf32>
    tpu.vector_store %arg15[%c0_32, %c0_33], %50 {strides = array<i32>} : memref<8x192xf32, #tpu.memory_space<vmem>>, vector<8x64xf32>,
    %c0_34 = arith.constant 0 : index
    %c64 = arith.constant 64 : index
    %52 = vector.load %arg15[%c0_34, %c64] : memref<8x192xf32, #tpu.memory_space<vmem>>, vector<8x64xf32>
    tpu.vector_store %arg15[%c0_34, %c64], %40 {strides = array<i32>} : memref<8x192xf32, #tpu.memory_space<vmem>>, vector<8x64xf32>,
    %c7_i32 = arith.constant 7 : i32
    %53 = vector.broadcast %c7_i32 : i32 to vector<8x1xi32>
    %54 = arith.cmpi eq, %43, %53 : vector<8x1xi32>
    %c7_i32_35 = arith.constant 7 : i32
    %55 = tpu.dynamic_rotate %40 by %c7_i32_35 dim 0 : vector<8x64xf32>, i32 -> vector<8x64xf32>
    %cst_36 = arith.constant 0.000000e+00 : f32
    %56 = vector.shape_cast %54 : vector<8x1xi1> to vector<8x1xi1>
    %57 = vector.broadcast %56 : vector<8x1xi1> to vector<8x64xi1>
    %58 = vector.broadcast %cst_36 : f32 to vector<8x64xf32>
    %59 = arith.select %57, %58, %55 : vector<8x64xi1>, vector<8x64xf32>
    %c0_37 = arith.constant 0 : index
    %c128 = arith.constant 128 : index
    %60 = vector.load %arg15[%c0_37, %c128] : memref<8x192xf32, #tpu.memory_space<vmem>>, vector<8x64xf32>
    tpu.vector_store %arg15[%c0_37, %c128], %59 {strides = array<i32>} : memref<8x192xf32, #tpu.memory_space<vmem>>, vector<8x64xf32>,
    %c0_38 = arith.constant 0 : index
    %c0_39 = arith.constant 0 : index
    %61 = vector.load %arg15[%c0_38, %c0_39] : memref<8x192xf32, #tpu.memory_space<vmem>>, vector<8x192xf32>
    %62 = arith.truncf %61 : vector<8x192xf32> to vector<8x192xbf16>
    %c0_40 = arith.constant 0 : index
    %c0_41 = arith.constant 0 : index
    %63 = vector.load %arg5[%c0_40, %c0_41] : memref<192x128xbf16, #tpu.memory_space<vmem>>, vector<192x128xbf16>
    %cst_42 = arith.constant dense<0.000000e+00> : vector<8x128xf32>
    %64 = tpu.matmul %62, %63, %cst_42 {dimension_numbers = #tpu.dot_dimension_numbers<[1], [0], [0], [1], [0, 0, 1, 1], [], []>} : vector<8x192xbf16>, vector<192x128xbf16>, vector<8x128xf32> -> vector<8x128xf32>
    %65 = vector.broadcast %41 : vector<1x128xf32> to vector<8x128xf32>
    %66 = arith.mulf %64, %65 : vector<8x128xf32>
    %67 = vector.broadcast %42 : vector<1x128xf32> to vector<8x128xf32>
    %68 = arith.addf %66, %67 : vector<8x128xf32>
    %cst_43 = arith.constant 0.000000e+00 : f32
    %69 = vector.broadcast %cst_43 : f32 to vector<8x128xf32>
    %70 = arith.cmpf ogt, %68, %69 : vector<8x128xf32>
    %cst_44 = arith.constant 1.000000e-01 : f32
    %71 = vector.broadcast %cst_44 : f32 to vector<8x128xf32>
    %72 = arith.mulf %71, %68 : vector<8x128xf32>
    %73 = arith.select %70, %68, %72 : vector<8x128xi1>, vector<8x128xf32>
    %c7_i32_45 = arith.constant 7 : i32
    %74 = tpu.dynamic_rotate %73 by %c7_i32_45 dim 0 : vector<8x128xf32>, i32 -> vector<8x128xf32>
    %75 = arith.addf %73, %74 : vector<8x128xf32>
    %c0_46 = arith.constant 0 : index
    %c0_47 = arith.constant 0 : index
    %76 = vector.load %arg16[%c0_46, %c0_47] : memref<8x128xf32, #tpu.memory_space<vmem>>, vector<8x128xf32>
    tpu.vector_store %arg16[%c0_46, %c0_47], %75 {strides = array<i32>} : memref<8x128xf32, #tpu.memory_space<vmem>>, vector<8x128xf32>,
    %c0_48 = arith.constant 0 : index
    %c0_49 = arith.constant 0 : index
    %77 = tpu.strided_load %arg16[%c0_48, %c0_49] {strides = array<i32: 2, 1>} : memref<8x128xf32, #tpu.memory_space<vmem>>, vector<4x128xf32>
    %cst_50 = arith.constant 5.000000e-01 : f32
    %78 = vector.broadcast %cst_50 : f32 to vector<4x128xf32>
    %79 = arith.mulf %78, %77 : vector<4x128xf32>
    %80 = vector.extract_strided_slice %79 {offsets = [0, 0], sizes = [1, 128], strides = [1, 1]} : vector<4x128xf32> to vector<1x128xf32>
    %c0_51 = arith.constant 0 : index
    %c0_52 = arith.constant 0 : index
    %81 = vector.load %arg17[%c0_51, %c0_52] : memref<1x512xf32, #tpu.memory_space<vmem>>, vector<1x128xf32>
    tpu.vector_store %arg17[%c0_51, %c0_52], %80 {strides = array<i32>} : memref<1x512xf32, #tpu.memory_space<vmem>>, vector<1x128xf32>,
    %82 = vector.extract_strided_slice %79 {offsets = [1, 0], sizes = [1, 128], strides = [1, 1]} : vector<4x128xf32> to vector<1x128xf32>
    %c0_53 = arith.constant 0 : index
    %c128_54 = arith.constant 128 : index
    %83 = vector.load %arg17[%c0_53, %c128_54] : memref<1x512xf32, #tpu.memory_space<vmem>>, vector<1x128xf32>
    tpu.vector_store %arg17[%c0_53, %c128_54], %82 {strides = array<i32>} : memref<1x512xf32, #tpu.memory_space<vmem>>, vector<1x128xf32>,
    %84 = vector.extract_strided_slice %79 {offsets = [2, 0], sizes = [1, 128], strides = [1, 1]} : vector<4x128xf32> to vector<1x128xf32>
    %c0_55 = arith.constant 0 : index
    %c256 = arith.constant 256 : index
    %85 = vector.load %arg17[%c0_55, %c256] : memref<1x512xf32, #tpu.memory_space<vmem>>, vector<1x128xf32>
    tpu.vector_store %arg17[%c0_55, %c256], %84 {strides = array<i32>} : memref<1x512xf32, #tpu.memory_space<vmem>>, vector<1x128xf32>,
    %86 = vector.extract_strided_slice %79 {offsets = [3, 0], sizes = [1, 128], strides = [1, 1]} : vector<4x128xf32> to vector<1x128xf32>
    %c0_56 = arith.constant 0 : index
    %c384 = arith.constant 384 : index
    %87 = vector.load %arg17[%c0_56, %c384] : memref<1x512xf32, #tpu.memory_space<vmem>>, vector<1x128xf32>
    tpu.vector_store %arg17[%c0_56, %c384], %86 {strides = array<i32>} : memref<1x512xf32, #tpu.memory_space<vmem>>, vector<1x128xf32>,
    %c0_57 = arith.constant 0 : index
    %c0_58 = arith.constant 0 : index
    %88 = vector.load %arg17[%c0_57, %c0_58] : memref<1x512xf32, #tpu.memory_space<vmem>>, vector<1x512xf32>
    %89 = arith.truncf %88 : vector<1x512xf32> to vector<1x512xbf16>
    %c0_59 = arith.constant 0 : index
    %c0_60 = arith.constant 0 : index
    %90 = vector.load %arg8[%c0_59, %c0_60] : memref<512x256xbf16, #tpu.memory_space<vmem>>, vector<512x256xbf16>
    %cst_61 = arith.constant dense<0.000000e+00> : vector<1x256xf32>
    %91 = tpu.matmul %89, %90, %cst_61 {dimension_numbers = #tpu.dot_dimension_numbers<[1], [0], [0], [1], [0, 0, 1, 1], [], []>} : vector<1x512xbf16>, vector<512x256xbf16>, vector<1x256xf32> -> vector<1x256xf32>
    %c0_62 = arith.constant 0 : index
    %c0_63 = arith.constant 0 : index
    %92 = vector.load %arg9[%c0_62, %c0_63] : memref<1x256xf32, #tpu.memory_space<vmem>>, vector<1x256xf32>
    %93 = arith.addf %91, %92 : vector<1x256xf32>
    %cst_64 = arith.constant 0.000000e+00 : f32
    %94 = vector.broadcast %cst_64 : f32 to vector<1x256xf32>
    %95 = arith.cmpf ogt, %93, %94 : vector<1x256xf32>
    %cst_65 = arith.constant 1.000000e-01 : f32
    %96 = vector.broadcast %cst_65 : f32 to vector<1x256xf32>
    %97 = arith.mulf %96, %93 : vector<1x256xf32>
    %98 = arith.select %95, %93, %97 : vector<1x256xi1>, vector<1x256xf32>
    %99 = arith.truncf %98 : vector<1x256xf32> to vector<1x256xbf16>
    %c0_66 = arith.constant 0 : index
    %c0_67 = arith.constant 0 : index
    %100 = vector.load %arg10[%c0_66, %c0_67] : memref<256x128xbf16, #tpu.memory_space<vmem>>, vector<256x128xbf16>
    %cst_68 = arith.constant dense<0.000000e+00> : vector<1x128xf32>
    %101 = tpu.matmul %99, %100, %cst_68 {dimension_numbers = #tpu.dot_dimension_numbers<[1], [0], [0], [1], [0, 0, 1, 1], [], []>} : vector<1x256xbf16>, vector<256x128xbf16>, vector<1x128xf32> -> vector<1x128xf32>
    %c0_69 = arith.constant 0 : index
    %c0_70 = arith.constant 0 : index
    %102 = vector.load %arg11[%c0_69, %c0_70] : memref<1x128xf32, #tpu.memory_space<vmem>>, vector<1x128xf32>
    %103 = arith.addf %101, %102 : vector<1x128xf32>
    %104 = vector.shape_cast %103 : vector<1x128xf32> to vector<1x1x128xf32>
    %c0_71 = arith.constant 0 : index
    %c0_72 = arith.constant 0 : index
    %c0_73 = arith.constant 0 : index
    %105 = vector.load %arg12[%c0_71, %c0_72, %c0_73] : memref<1x1x128xf32, #tpu.memory_space<vmem>>, vector<1x1x128xf32>
    tpu.vector_store %arg12[%c0_71, %c0_72, %c0_73], %104 {strides = array<i32>} : memref<1x1x128xf32, #tpu.memory_space<vmem>>, vector<1x1x128xf32>,
    return
  }
  func.func @transform_0(%arg0: i32) -> (i32, i32, i32) {
    %c0_i32 = arith.constant 0 : i32
    %c0_i32_0 = arith.constant 0 : i32
    %c0_i32_1 = arith.constant 0 : i32
    return %arg0, %c0_i32, %c0_i32_0 : i32, i32, i32
  }
  func.func @transform_1(%arg0: i32) -> (i32, i32) {
    %c0_i32 = arith.constant 0 : i32
    %c0_i32_0 = arith.constant 0 : i32
    %c0_i32_1 = arith.constant 0 : i32
    return %c0_i32, %c0_i32_0 : i32, i32
  }
  func.func @transform_2(%arg0: i32) -> (i32, i32) {
    %c0_i32 = arith.constant 0 : i32
    %c0_i32_0 = arith.constant 0 : i32
    %c0_i32_1 = arith.constant 0 : i32
    return %c0_i32, %c0_i32_0 : i32, i32
  }
  func.func @transform_3(%arg0: i32) -> (i32, i32) {
    %c0_i32 = arith.constant 0 : i32
    %c0_i32_0 = arith.constant 0 : i32
    %c0_i32_1 = arith.constant 0 : i32
    return %c0_i32, %c0_i32_0 : i32, i32
  }
  func.func @transform_4(%arg0: i32) -> (i32, i32) {
    %c0_i32 = arith.constant 0 : i32
    %c0_i32_0 = arith.constant 0 : i32
    %c0_i32_1 = arith.constant 0 : i32
    return %c0_i32, %c0_i32_0 : i32, i32
  }
  func.func @transform_5(%arg0: i32) -> (i32, i32) {
    %c0_i32 = arith.constant 0 : i32
    %c0_i32_0 = arith.constant 0 : i32
    %c0_i32_1 = arith.constant 0 : i32
    return %c0_i32, %c0_i32_0 : i32, i32
  }
  func.func @transform_6(%arg0: i32) -> (i32, i32) {
    %c0_i32 = arith.constant 0 : i32
    %c0_i32_0 = arith.constant 0 : i32
    %c0_i32_1 = arith.constant 0 : i32
    return %c0_i32, %c0_i32_0 : i32, i32
  }
  func.func @transform_7(%arg0: i32) -> (i32, i32) {
    %c0_i32 = arith.constant 0 : i32
    %c0_i32_0 = arith.constant 0 : i32
    %c0_i32_1 = arith.constant 0 : i32
    return %c0_i32, %c0_i32_0 : i32, i32
  }
  func.func @transform_8(%arg0: i32) -> (i32, i32) {
    %c0_i32 = arith.constant 0 : i32
    %c0_i32_0 = arith.constant 0 : i32
    %c0_i32_1 = arith.constant 0 : i32
    return %c0_i32, %c0_i32_0 : i32, i32
  }
  func.func @transform_9(%arg0: i32) -> (i32, i32) {
    %c0_i32 = arith.constant 0 : i32
    %c0_i32_0 = arith.constant 0 : i32
    %c0_i32_1 = arith.constant 0 : i32
    return %c0_i32, %c0_i32_0 : i32, i32
  }
  func.func @transform_10(%arg0: i32) -> (i32, i32) {
    %c0_i32 = arith.constant 0 : i32
    %c0_i32_0 = arith.constant 0 : i32
    %c0_i32_1 = arith.constant 0 : i32
    return %c0_i32, %c0_i32_0 : i32, i32
  }
  func.func @transform_11(%arg0: i32) -> (i32, i32, i32) {
    %c0_i32 = arith.constant 0 : i32
    %c0_i32_0 = arith.constant 0 : i32
    %c0_i32_1 = arith.constant 0 : i32
    return %arg0, %c0_i32, %c0_i32_0 : i32, i32, i32
  }
}

</mosaic_0001>

<llo_original>
// kernel: var_cnn_forward.1
$region0: #{var_cnn_forward.1}
  #allocation0 [shape = 'u32[]', space=smem, size = 0x4, offset = 0x4, fixed_abs, tag = 'smem constant byte address 0x4 - core index']
  #allocation1 [shape = 'u32[144,128]{1,0:T(1,128)}', space=vmem, size = 0x12000, scoped, tag = 'internal scratch']
  #allocation2 [shape = 'f32[16,48]{1,0:T(8,128)}', space=vmem, size = 0x2000, scoped, tag = 'scratch operand']
  #allocation3 [shape = 'f32[16,64]{1,0:T(8,128)}', space=vmem, size = 0x2000, scoped, tag = 'scratch operand']
  #allocation4 [shape = 'f32[8,192]{1,0:T(8,128)}', space=vmem, size = 0x2000, scoped, tag = 'scratch operand']
  #allocation5 [shape = 'f32[8,128]{1,0:T(8,128)}', space=vmem, size = 0x1000, scoped, tag = 'scratch operand']
  #allocation6 [shape = 'f32[1,512]{1,0:T(1,128)}', space=vmem, size = 0x800, scoped, tag = 'scratch operand']
  %s0 = inlined_call_operand.vmem [shape: f32[2,16,16], index: 0, kind: input, shape index: {}]
  %s1 = inlined_call_operand.hbm [shape: bf16[48,64], index: 1, kind: input, shape index: {}]
  %s2 = inlined_call_operand.vmem [shape: f32[1,64], index: 2, kind: input, shape index: {}]
  %s3 = inlined_call_operand.vmem [shape: f32[1,64], index: 3, kind: input, shape index: {}]
  %s4 = inlined_call_operand.vmem [shape: bf16[192,128], index: 4, kind: input, shape index: {}]
  %s5 = inlined_call_operand.vmem [shape: f32[1,128], index: 5, kind: input, shape index: {}]
  %s6 = inlined_call_operand.vmem [shape: f32[1,128], index: 6, kind: input, shape index: {}]
  %s7 = inlined_call_operand.hbm [shape: bf16[512,256], index: 7, kind: input, shape index: {}]
  %s8 = inlined_call_operand.vmem [shape: f32[1,256], index: 8, kind: input, shape index: {}]
  %s9 = inlined_call_operand.hbm [shape: bf16[256,128], index: 9, kind: input, shape index: {}]
  %s10 = inlined_call_operand.vmem [shape: f32[1,128], index: 10, kind: input, shape index: {}]
  %s11 = inlined_call_operand.hbm [shape: f32[2,1,128], index: 11, kind: output, shape index: {}]
  %s12 = sld [smem:[#allocation0]]
  $region89: #{var_cnn_forward.1} parent=0
    _
  %s14 = ssub.s32 1, %s12
  %s15 = scalar_select 0, %s14, %s12
  $region1: #{var_cnn_forward.1} parent=0
    #allocation7 [shape = 'u8[12288]{0}', space=vmem, size = 0x3000, scoped, tag = 'input window, operand 1, single buffered']
    #allocation8 [shape = 's32[2]{0}', space=sflag, size = 0x8, scoped, tag = 'scoped memory for var_cnn_forward.1']
    #allocation9 [shape = 's32[2]{0}', space=sflag, size = 0x8, scoped, tag = 'scoped memory for var_cnn_forward.1']
    #allocation10 [shape = 'u8[262144]{0}', space=vmem, size = 0x40000, scoped, tag = 'input window, operand 7, single buffered']
    #allocation11 [shape = 's32[1]{0}', space=sflag, size = 0x4, scoped, tag = 'scoped memory for var_cnn_forward.1']
    #allocation12 [shape = 'u8[65536]{0}', space=vmem, size = 0x10000, scoped, tag = 'input window, operand 9, single buffered']
    #allocation13 [shape = 'u8[1024]{0}', space=vmem, size = 0x400, scoped, tag = 'output window, operand 0']
    %16 = vsyncpa [#allocation8], 0
    %17 = vsyncpa [#allocation11], 0
    %18 = vsyncpa [#allocation9], 0
    %s19 = scalar_lea.sflag [#allocation9], 1
    %20 = vsyncpa %s19, 0
    loop: start=0, step=1, limit=4
    $region2: #{var_cnn_forward.1} parent=1 // loop_pre_header
      _
    $region3: #{var_cnn_forward.1} parent=1 // loop_header
      %s22 = sphi 0, %s26
      %p23 = scmp.ge.s32.totalorder %s22, 4
      %s32 = sphi 0, %s34
      %s35 = sphi 0, %s32
      %s36 = sphi 0, %s35
      %s52 = sphi 0, %s36
      %s56 = sphi 0, %s56
      %s58 = sphi 0, %s56
      %s59 = sphi 0, %s58
      %s73 = sphi 0, %s59
      %s77 = sphi 0, %s77
      %s79 = sphi 0, %s77
      %s80 = sphi 0, %s79
      %s94 = sphi 0, %s80
      %s98 = sphi 0, %s98
      %s100 = sphi 0, %s98
      %s101 = sphi 0, %s100
      %s115 = sphi 0, %s101
      %s119 = sphi 0, %s119
      %s121 = sphi 0, %s119
      %s122 = sphi 0, %s121
      %s136 = sphi 0, %s122
      %s140 = sphi 0, %s140
      %s142 = sphi 0, %s140
      %s143 = sphi 0, %s142
      %s157 = sphi 0, %s143
      %s161 = sphi 0, %s161
      %s163 = sphi 0, %s161
      %s164 = sphi 0, %s163
      %s178 = sphi 0, %s164
      %s182 = sphi 0, %s182
      %s184 = sphi 0, %s182
      %s185 = sphi 0, %s184
      %s199 = sphi 0, %s185
      %s203 = sphi 0, %s203
      %s205 = sphi 0, %s203
      %s206 = sphi 0, %s205
      %s220 = sphi 0, %s206
      %s224 = sphi 0, %s224
      %s226 = sphi 0, %s224
      %s227 = sphi 0, %s226
      %s241 = sphi 0, %s227
      %s245 = sphi 0, %s245
      %s247 = sphi 0, %s245
      %s248 = sphi 0, %s247
      %s262 = sphi 0, %s248
      %s268 = sphi 0, %s270
      %s271 = sphi 0, %s268
      %s272 = sphi 0, %s271
      %s288 = sphi 0, %s272
    $region4: #{var_cnn_forward.1} parent=1 // loop_header_branch
      %25 = sbr.rel (%p23) target = $region8
    $region5: #{var_cnn_forward.1} parent=1 // loop_body
      %s27 = ssub.s32 %s22, 1
      %s28 = ssub.s32 %s22, 2
      %s29 = sadd.s32 %s22, 1
      %s30 = ssub.s32 %s22, %s29
      %p31 = scmp.eq.s32.totalorder %s30, 0
      %s33 = sadd.s32 %s32, 1
      %s34 = scalar_select %p31, %s32, %s33
      %p37 = pneg %p31
      %p38 = scmp.eq.s32.totalorder %s22, 1
      %p39 = por %p37, %p38
      %p40 = scmp.ne.s32.totalorder %s32, %s35
      %p41 = scmp.eq.s32.totalorder %s22, 0
      %p42 = por %p40, %p41
      %p43 = scmp.ne.s32.totalorder %s32, %s35
      %p44 = scmp.eq.s32.totalorder %s27, 1
      %p45 = por %p43, %p44
      %p46 = scmp.ne.s32.totalorder %s35, %s36
      %p47 = scmp.eq.s32.totalorder %s27, 0
      %p48 = por %p46, %p47
      %p49 = scmp.ne.s32.totalorder %s35, %s36
      %p50 = scmp.eq.s32.totalorder %s28, 1
      %p51 = por %p49, %p50
      %p53 = scmp.ne.s32.totalorder %s36, %s52
      %p54 = scmp.eq.s32.totalorder %s28, 0
      %p55 = por %p53, %p54
      %s57 = sadd.s32 %s56, 1
      %p60 = scmp.eq.s32.totalorder %s22, 1
      %p61 = scmp.ne.s32.totalorder %s56, %s58
      %p62 = scmp.eq.s32.totalorder %s22, 0
      %p63 = por %p61, %p62
      %p64 = scmp.ne.s32.totalorder %s56, %s58
      %p65 = scmp.eq.s32.totalorder %s27, 1
      %p66 = por %p64, %p65
      %p67 = scmp.ne.s32.totalorder %s58, %s59
      %p68 = scmp.eq.s32.totalorder %s27, 0
      %p69 = por %p67, %p68
      %p70 = scmp.ne.s32.totalorder %s58, %s59
      %p71 = scmp.eq.s32.totalorder %s28, 1
      %p72 = por %p70, %p71
      %p74 = scmp.ne.s32.totalorder %s59, %s73
      %p75 = scmp.eq.s32.totalorder %s28, 0
      %p76 = por %p74, %p75
      %s78 = sadd.s32 %s77, 1
      %p81 = scmp.eq.s32.totalorder %s22, 1
      %p82 = scmp.ne.s32.totalorder %s77, %s79
      %p83 = scmp.eq.s32.totalorder %s22, 0
      %p84 = por %p82, %p83
      %p85 = scmp.ne.s32.totalorder %s77, %s79
      %p86 = scmp.eq.s32.totalorder %s27, 1
      %p87 = por %p85, %p86
      %p88 = scmp.ne.s32.totalorder %s79, %s80
      %p89 = scmp.eq.s32.totalorder %s27, 0
      %p90 = por %p88, %p89
      %p91 = scmp.ne.s32.totalorder %s79, %s80
      %p92 = scmp.eq.s32.totalorder %s28, 1
      %p93 = por %p91, %p92
      %p95 = scmp.ne.s32.totalorder %s80, %s94
      %p96 = scmp.eq.s32.totalorder %s28, 0
      %p97 = por %p95, %p96
      %s99 = sadd.s32 %s98, 1
      %p102 = scmp.eq.s32.totalorder %s22, 1
      %p103 = scmp.ne.s32.totalorder %s98, %s100
      %p104 = scmp.eq.s32.totalorder %s22, 0
      %p105 = por %p103, %p104
      %p106 = scmp.ne.s32.totalorder %s98, %s100
      %p107 = scmp.eq.s32.totalorder %s27, 1
      %p108 = por %p106, %p107
      %p109 = scmp.ne.s32.totalorder %s100, %s101
      %p110 = scmp.eq.s32.totalorder %s27, 0
      %p111 = por %p109, %p110
      %p112 = scmp.ne.s32.totalorder %s100, %s101
      %p113 = scmp.eq.s32.totalorder %s28, 1
      %p114 = por %p112, %p113
      %p116 = scmp.ne.s32.totalorder %s101, %s115
      %p117 = scmp.eq.s32.totalorder %s28, 0
      %p118 = por %p116, %p117
      %s120 = sadd.s32 %s119, 1
      %p123 = scmp.eq.s32.totalorder %s22, 1
      %p124 = scmp.ne.s32.totalorder %s119, %s121
      %p125 = scmp.eq.s32.totalorder %s22, 0
      %p126 = por %p124, %p125
      %p127 = scmp.ne.s32.totalorder %s119, %s121
      %p128 = scmp.eq.s32.totalorder %s27, 1
      %p129 = por %p127, %p128
      %p130 = scmp.ne.s32.totalorder %s121, %s122
      %p131 = scmp.eq.s32.totalorder %s27, 0
      %p132 = por %p130, %p131
      %p133 = scmp.ne.s32.totalorder %s121, %s122
      %p134 = scmp.eq.s32.totalorder %s28, 1
      %p135 = por %p133, %p134
      %p137 = scmp.ne.s32.totalorder %s122, %s136
      %p138 = scmp.eq.s32.totalorder %s28, 0
      %p139 = por %p137, %p138
      %s141 = sadd.s32 %s140, 1
      %p144 = scmp.eq.s32.totalorder %s22, 1
      %p145 = scmp.ne.s32.totalorder %s140, %s142
      %p146 = scmp.eq.s32.totalorder %s22, 0
      %p147 = por %p145, %p146
      %p148 = scmp.ne.s32.totalorder %s140, %s142
      %p149 = scmp.eq.s32.totalorder %s27, 1
      %p150 = por %p148, %p149
      %p151 = scmp.ne.s32.totalorder %s142, %s143
      %p152 = scmp.eq.s32.totalorder %s27, 0
      %p153 = por %p151, %p152
      %p154 = scmp.ne.s32.totalorder %s142, %s143
      %p155 = scmp.eq.s32.totalorder %s28, 1
      %p156 = por %p154, %p155
      %p158 = scmp.ne.s32.totalorder %s143, %s157
      %p159 = scmp.eq.s32.totalorder %s28, 0
      %p160 = por %p158, %p159
      %s162 = sadd.s32 %s161, 1
      %p165 = scmp.eq.s32.totalorder %s22, 1
      %p166 = scmp.ne.s32.totalorder %s161, %s163
      %p167 = scmp.eq.s32.totalorder %s22, 0
      %p168 = por %p166, %p167
      %p169 = scmp.ne.s32.totalorder %s161, %s163
      %p170 = scmp.eq.s32.totalorder %s27, 1
      %p171 = por %p169, %p170
      %p172 = scmp.ne.s32.totalorder %s163, %s164
      %p173 = scmp.eq.s32.totalorder %s27, 0
      %p174 = por %p172, %p173
      %p175 = scmp.ne.s32.totalorder %s163, %s164
      %p176 = scmp.eq.s32.totalorder %s28, 1
      %p177 = por %p175, %p176
      %p179 = scmp.ne.s32.totalorder %s164, %s178
      %p180 = scmp.eq.s32.totalorder %s28, 0
      %p181 = por %p179, %p180
      %s183 = sadd.s32 %s182, 1
      %p186 = scmp.eq.s32.totalorder %s22, 1
      %p187 = scmp.ne.s32.totalorder %s182, %s184
      %p188 = scmp.eq.s32.totalorder %s22, 0
      %p189 = por %p187, %p188
      %p190 = scmp.ne.s32.totalorder %s182, %s184
      %p191 = scmp.eq.s32.totalorder %s27, 1
      %p192 = por %p190, %p191
      %p193 = scmp.ne.s32.totalorder %s184, %s185
      %p194 = scmp.eq.s32.totalorder %s27, 0
      %p195 = por %p193, %p194
      %p196 = scmp.ne.s32.totalorder %s184, %s185
      %p197 = scmp.eq.s32.totalorder %s28, 1
      %p198 = por %p196, %p197
      %p200 = scmp.ne.s32.totalorder %s185, %s199
      %p201 = scmp.eq.s32.totalorder %s28, 0
      %p202 = por %p200, %p201
      %s204 = sadd.s32 %s203, 1
      %p207 = scmp.eq.s32.totalorder %s22, 1
      %p208 = scmp.ne.s32.totalorder %s203, %s205
      %p209 = scmp.eq.s32.totalorder %s22, 0
      %p210 = por %p208, %p209
      %p211 = scmp.ne.s32.totalorder %s203, %s205
      %p212 = scmp.eq.s32.totalorder %s27, 1
      %p213 = por %p211, %p212
      %p214 = scmp.ne.s32.totalorder %s205, %s206
      %p215 = scmp.eq.s32.totalorder %s27, 0
      %p216 = por %p214, %p215
      %p217 = scmp.ne.s32.totalorder %s205, %s206
      %p218 = scmp.eq.s32.totalorder %s28, 1
      %p219 = por %p217, %p218
      %p221 = scmp.ne.s32.totalorder %s206, %s220
      %p222 = scmp.eq.s32.totalorder %s28, 0
      %p223 = por %p221, %p222
      %s225 = sadd.s32 %s224, 1
      %p228 = scmp.eq.s32.totalorder %s22, 1
      %p229 = scmp.ne.s32.totalorder %s224, %s226
      %p230 = scmp.eq.s32.totalorder %s22, 0
      %p231 = por %p229, %p230
      %p232 = scmp.ne.s32.totalorder %s224, %s226
      %p233 = scmp.eq.s32.totalorder %s27, 1
      %p234 = por %p232, %p233
      %p235 = scmp.ne.s32.totalorder %s226, %s227
      %p236 = scmp.eq.s32.totalorder %s27, 0
      %p237 = por %p235, %p236
      %p238 = scmp.ne.s32.totalorder %s226, %s227
      %p239 = scmp.eq.s32.totalorder %s28, 1
      %p240 = por %p238, %p239
      %p242 = scmp.ne.s32.totalorder %s227, %s241
      %p243 = scmp.eq.s32.totalorder %s28, 0
      %p244 = por %p242, %p243
      %s246 = sadd.s32 %s245, 1
      %p249 = scmp.eq.s32.totalorder %s22, 1
      %p250 = scmp.ne.s32.totalorder %s245, %s247
      %p251 = scmp.eq.s32.totalorder %s22, 0
      %p252 = por %p250, %p251
      %p253 = scmp.ne.s32.totalorder %s245, %s247
      %p254 = scmp.eq.s32.totalorder %s27, 1
      %p255 = por %p253, %p254
      %p256 = scmp.ne.s32.totalorder %s247, %s248
      %p257 = scmp.eq.s32.totalorder %s27, 0
      %p258 = por %p256, %p257
      %p259 = scmp.ne.s32.totalorder %s247, %s248
      %p260 = scmp.eq.s32.totalorder %s28, 1
      %p261 = por %p259, %p260
      %p263 = scmp.ne.s32.totalorder %s248, %s262
      %p264 = scmp.eq.s32.totalorder %s28, 0
      %p265 = por %p263, %p264
      %s266 = ssub.s32 %s22, %s29
      %p267 = scmp.eq.s32.totalorder %s266, 0
      %s269 = sadd.s32 %s268, 1
      %s270 = scalar_select %p267, %s268, %s269
      %p273 = pneg %p267
      %p274 = scmp.eq.s32.totalorder %s22, 1
      %p275 = por %p273, %p274
      %p276 = scmp.ne.s32.totalorder %s268, %s271
      %p277 = scmp.eq.s32.totalorder %s22, 0
      %p278 = por %p276, %p277
      %p279 = scmp.ne.s32.totalorder %s268, %s271
      %p280 = scmp.eq.s32.totalorder %s27, 1
      %p281 = por %p279, %p280
      %p282 = scmp.ne.s32.totalorder %s271, %s272
      %p283 = scmp.eq.s32.totalorder %s27, 0
      %p284 = por %p282, %p283
      %p285 = scmp.ne.s32.totalorder %s271, %s272
      %p286 = scmp.eq.s32.totalorder %s28, 1
      %p287 = por %p285, %p286
      %p289 = scmp.ne.s32.totalorder %s272, %s288
      %p290 = scmp.eq.s32.totalorder %s28, 0
      %p291 = por %p289, %p290
      %p292 = scmp.le.s32.totalorder 1, %s22
      %p293 = scmp.lt.s32.totalorder %s22, 3
      %p294 = pnand %p292, %p293
      %p295 = pneg %p294
      // Predicated region
      $region9: #{var_cnn_forward.1} parent=5 // pred_check
        _
      $region10: #{var_cnn_forward.1} parent=5 // pred_check_branch
        %297 = sbr.rel (%p294) target = $region12
      $region11: #{var_cnn_forward.1} parent=5 // pred_region
        %s298 = ssub.s32 %s22, 1
        // Predicated region
        $region13: #{var_cnn_forward.1} parent=11 // pred_check
          %p299 = pneg %p69
        $region14: #{var_cnn_forward.1} parent=11 // pred_check_branch
          %301 = sbr.rel (%p299) target = $region16
        $region15: #{var_cnn_forward.1} parent=11 // pred_region
          %s303 = ssub.s32 384, 384
          %304 = vsyncadd [#allocation8], %s303
          %s305 = sshll.u32 [#allocation7], 4
          %s306 = int_to_ptr.vmem [resolvable:$true] %s305
          %311 = dma.hbm_to_vmem [thread:$0]  %s1, 384, %s306, [#allocation8], 64, 64, 4
        $region16: #{var_cnn_forward.1} parent=11 // pred_fallthru
          _
        // Predicated region
        $region17: #{var_cnn_forward.1} parent=11 // pred_check
          %p312 = pneg %p90
        $region18: #{var_cnn_forward.1} parent=11 // pred_check_branch
          %314 = sbr.rel (%p312) target = $region20
        $region19: #{var_cnn_forward.1} parent=11 // pred_region
          _
        $region20: #{var_cnn_forward.1} parent=11 // pred_fallthru
          _
        // Predicated region
        $region21: #{var_cnn_forward.1} parent=11 // pred_check
          %p315 = pneg %p111
        $region22: #{var_cnn_forward.1} parent=11 // pred_check_branch
          %317 = sbr.rel (%p315) target = $region24
        $region23: #{var_cnn_forward.1} parent=11 // pred_region
          _
        $region24: #{var_cnn_forward.1} parent=11 // pred_fallthru
          _
        // Predicated region
        $region25: #{var_cnn_forward.1} parent=11 // pred_check
          %p318 = pneg %p132
        $region26: #{var_cnn_forward.1} parent=11 // pred_check_branch
          %320 = sbr.rel (%p318) target = $region28
        $region27: #{var_cnn_forward.1} parent=11 // pred_region
          _
        $region28: #{var_cnn_forward.1} parent=11 // pred_fallthru
          _
        // Predicated region
        $region29: #{var_cnn_forward.1} parent=11 // pred_check
          %p321 = pneg %p153
        $region30: #{var_cnn_forward.1} parent=11 // pred_check_branch
          %323 = sbr.rel (%p321) target = $region32
        $region31: #{var_cnn_forward.1} parent=11 // pred_region
          _
        $region32: #{var_cnn_forward.1} parent=11 // pred_fallthru
          _
        // Predicated region
        $region33: #{var_cnn_forward.1} parent=11 // pred_check
          %p324 = pneg %p174
        $region34: #{var_cnn_forward.1} parent=11 // pred_check_branch
          %326 = sbr.rel (%p324) target = $region36
        $region35: #{var_cnn_forward.1} parent=11 // pred_region
          _
        $region36: #{var_cnn_forward.1} parent=11 // pred_fallthru
          _
        // Predicated region
        $region37: #{var_cnn_forward.1} parent=11 // pred_check
          %p327 = pneg %p195
        $region38: #{var_cnn_forward.1} parent=11 // pred_check_branch
          %329 = sbr.rel (%p327) target = $region40
        $region39: #{var_cnn_forward.1} parent=11 // pred_region
          %s331 = ssub.s32 8192, 8192
          %332 = vsyncadd [#allocation11], %s331
          %s333 = sshll.u32 [#allocation10], 4
          %s334 = int_to_ptr.vmem [resolvable:$true] %s333
          %339 = dma.hbm_to_vmem [thread:$0]  %s7, 8192, %s334, [#allocation11], 128, 128, 8
        $region40: #{var_cnn_forward.1} parent=11 // pred_fallthru
          _
        // Predicated region
        $region41: #{var_cnn_forward.1} parent=11 // pred_check
          %p340 = pneg %p216
        $region42: #{var_cnn_forward.1} parent=11 // pred_check_branch
          %342 = sbr.rel (%p340) target = $region44
        $region43: #{var_cnn_forward.1} parent=11 // pred_region
          _
        $region44: #{var_cnn_forward.1} parent=11 // pred_fallthru
          _
        // Predicated region
        $region45: #{var_cnn_forward.1} parent=11 // pred_check
          %p343 = pneg %p237
        $region46: #{var_cnn_forward.1} parent=11 // pred_check_branch
          %345 = sbr.rel (%p343) target = $region48
        $region47: #{var_cnn_forward.1} parent=11 // pred_region
          %s347 = ssub.s32 2048, 2048
          %348 = vsyncadd [#allocation11], %s347
          %s349 = sshll.u32 [#allocation12], 4
          %s350 = int_to_ptr.vmem [resolvable:$true] %s349
          %355 = dma.hbm_to_vmem [thread:$0]  %s9, 2048, %s350, [#allocation11], 64, 64, 4
        $region48: #{var_cnn_forward.1} parent=11 // pred_fallthru
          _
        // Predicated region
        $region49: #{var_cnn_forward.1} parent=11 // pred_check
          %p356 = pneg %p258
        $region50: #{var_cnn_forward.1} parent=11 // pred_check_branch
          %358 = sbr.rel (%p356) target = $region52
        $region51: #{var_cnn_forward.1} parent=11 // pred_region
          _
        $region52: #{var_cnn_forward.1} parent=11 // pred_fallthru
          _
      $region12: #{var_cnn_forward.1} parent=5 // pred_fallthru
        _
      %p359 = scmp.lt.s32.totalorder %s22, 2
      // Predicated region
      $region53: #{var_cnn_forward.1} parent=5 // pred_check
        %p360 = pneg %p359
      $region54: #{var_cnn_forward.1} parent=5 // pred_check_branch
        %362 = sbr.rel (%p360) target = $region56
      $region55: #{var_cnn_forward.1} parent=5 // pred_region
        // Predicated region
        $region57: #{var_cnn_forward.1} parent=55 // pred_check
          %p363 = pneg %p42
        $region58: #{var_cnn_forward.1} parent=55 // pred_check_branch
          %365 = sbr.rel (%p363) target = $region60
        $region59: #{var_cnn_forward.1} parent=55 // pred_region
          %p366 = scmp.lt.s32.totalorder %s22, 1
          %s367 = scalar_select %p366, %s22, 1
          %s368 = smul.addr %s367, 2
          %s369 = smul.addr %s368, 8
          %s370 = scalar_lea.vmem %s0, %s369
        $region60: #{var_cnn_forward.1} parent=55 // pred_fallthru
          _
      $region56: #{var_cnn_forward.1} parent=5 // pred_fallthru
        _
      %p371 = scmp.le.s32.totalorder 1, %s22
      %p372 = scmp.lt.s32.totalorder %s22, 3
      %p373 = pnand %p371, %p372
      %p374 = pneg %p373
      // Predicated region
      $region61: #{var_cnn_forward.1} parent=5 // pred_check
        _
      $region62: #{var_cnn_forward.1} parent=5 // pred_check_branch
        %376 = sbr.rel (%p373) target = $region64
      $region63: #{var_cnn_forward.1} parent=5 // pred_region
        %s377 = ssub.s32 %s22, 1
        // Predicated region
        $region65: #{var_cnn_forward.1} parent=63 // pred_check
          %p378 = pneg %p69
        $region66: #{var_cnn_forward.1} parent=63 // pred_check_branch
          %380 = sbr.rel (%p378) target = $region68
        $region67: #{var_cnn_forward.1} parent=63 // pred_region
          %381 = dma.done [#allocation8], 384
        $region68: #{var_cnn_forward.1} parent=63 // pred_fallthru
          _
        // Predicated region
        $region69: #{var_cnn_forward.1} parent=63 // pred_check
          %p382 = pneg %p195
        $region70: #{var_cnn_forward.1} parent=63 // pred_check_branch
          %384 = sbr.rel (%p382) target = $region72
        $region71: #{var_cnn_forward.1} parent=63 // pred_region
          %385 = dma.done [#allocation11], 8192
        $region72: #{var_cnn_forward.1} parent=63 // pred_fallthru
          _
        // Predicated region
        $region73: #{var_cnn_forward.1} parent=63 // pred_check
          %p386 = pneg %p237
        $region74: #{var_cnn_forward.1} parent=63 // pred_check_branch
          %388 = sbr.rel (%p386) target = $region76
        $region75: #{var_cnn_forward.1} parent=63 // pred_region
          %389 = dma.done [#allocation11], 2048
        $region76: #{var_cnn_forward.1} parent=63 // pred_fallthru
          _
        %p390 = scmp.lt.s32.totalorder %s27, 1
        %s391 = scalar_select %p390, %s27, 1
        %s392 = smul.addr %s391, 2
        %s393 = smul.addr %s392, 8
        %s394 = scalar_lea.vmem %s0, %s393
        %p395 = pneg %p48
        %p396 = pneg %p45
        %p397 = pneg %p69
        %p398 = pneg %p66
        %p399 = pneg %p90
        %p400 = pneg %p87
        %p401 = pneg %p111
        %p402 = pneg %p108
        %p403 = pneg %p132
        %p404 = pneg %p129
        %p405 = pneg %p153
        %p406 = pneg %p150
        %p407 = pneg %p174
        %p408 = pneg %p171
        %p409 = pneg %p195
        %p410 = pneg %p192
        %p411 = pneg %p216
        %p412 = pneg %p213
        %p413 = pneg %p237
        %p414 = pneg %p234
        %p415 = pneg %p258
        %p416 = pneg %p255
        %p417 = pneg %p284
        %p418 = pneg %p281
        %s419 = sand.u32 %s271, 1
        %s420 = scalar_lea.sflag [#allocation9], %s419
        %s421 = sand.u32 %s271, 1
        %s422 = scalar_lea.vmem [#allocation13], %s421
        %p423 = scmp.lt.s32.totalorder %s27, 1
        %s424 = scalar_select %p423, %s27, 1
        %s425 = smul.addr %s424, 2
        %s426 = smul.addr %s425, 8
        %s427 = scalar_lea.vmem %s0, %s426
        %v429 = vld [vmem:[%s427] sm:$0xff]
        %v430 = vld [vmem:[%s427 + $0x8] sm:$0xff]
        %v431 = vld [vmem:[%s2] sm:$0x1]
        %v432 = vld [vmem:[%s3] sm:$0x1]
        %v433 = vlaneseq
        %v434 = vshrl.u32 %v433, 7
        %v435 = vadd.s32 %v434, 8
        %vm436 = vcmp.eq.s32.totalorder %v434, 0
        %vm437 = vcmp.eq.s32.totalorder %v435, 0
        %v438 = vrot.slane %v429, 7
        %v439 = vrot.slane %v430, 7
        %vm440 = vcmp.lt.s32.totalorder %v434, 1
        %v441 = vsel %vm440, %v438, %v439
        %v442 = vsel %vm440, %v439, %v438
        %v443 = vsel %vm436, 1, 0
        %v444 = vsel %vm437, 1, 0
        %vm445 = vcmp.eq.s32.totalorder %v443, 1
        %vm446 = vcmp.eq.s32.totalorder %v444, 1
        %v447 = vsel %vm445, 0.0, %v442
        %v448 = vsel %vm446, 0.0, %v441
        %vm449 = vcmask 130048
        %450 = vst.msk [vmem:[#allocation2] sm:$0xff] %vm449, %v447
        %451 = vst.msk [vmem:[#allocation2 + $0x8] sm:$0xff] %vm449, %v448
        %454 = vrot.lane.b32.xlu0 %v429, 16
        %v455 = vpop.permute.xlu0 %454
        %456 = vrot.lane.b32.xlu0 %v430, 16
        %v457 = vpop.permute.xlu0 %456
        %vm460 = vcmask 261248
        %461 = vst.msk [vmem:[#allocation2] sm:$0xff] %vm460, %v455
        %462 = vst.msk [vmem:[#allocation2 + $0x8] sm:$0xff] %vm460, %v457
        %vm463 = vcmp.eq.s32.totalorder %v434, 15
        %vm464 = vcmp.eq.s32.totalorder %v435, 15
        %v465 = vrot.slane %v429, 1
        %v466 = vrot.slane %v430, 1
        %vm467 = vcmp.lt.s32.totalorder %v434, 7
        %v468 = vsel %vm467, %v465, %v466
        %v469 = vsel %vm467, %v466, %v465
        %v470 = vsel %vm463, 1, 0
        %v471 = vsel %vm464, 1, 0
        %vm472 = vcmp.eq.s32.totalorder %v470, 1
        %vm473 = vcmp.eq.s32.totalorder %v471, 1
        %v474 = vsel %vm472, 0.0, %v468
        %v475 = vsel %vm473, 0.0, %v469
        %478 = vrot.lane.b32.xlu0 %v474, 32
        %v479 = vpop.permute.xlu0 %478
        %480 = vrot.lane.b32.xlu0 %v475, 32
        %v481 = vpop.permute.xlu0 %480
        %vm484 = vcmask 392448
        %485 = vst.msk [vmem:[#allocation2] sm:$0xff] %vm484, %v479
        %486 = vst.msk [vmem:[#allocation2 + $0x8] sm:$0xff] %vm484, %v481
        %v487 = vld [vmem:[#allocation2] sm:$0xff]
        %v488 = vld [vmem:[#allocation2 + $0x8] sm:$0xff]
        %v489 = vpack.c.bf16 %v488, %v487
        %v490 = vld [vmem:[#allocation7] sm:$0xf]
        %v491 = vld [vmem:[#allocation7 + $0x4] sm:$0xf]
        %v492 = vld [vmem:[#allocation7 + $0x8] sm:$0xf]
        %v493 = vld [vmem:[#allocation7 + $0xc] sm:$0xf]
        %v494 = vld [vmem:[#allocation7 + $0x10] sm:$0xf]
        %v495 = vld [vmem:[#allocation7 + $0x14] sm:$0xf]
        %v502 = vunpack.c.l.b16 %v490
        %v503 = vunpack.c.l.b16 %v491
        %v504 = vunpack.c.l.b16 %v492
        %v505 = vunpack.c.l.b16 %v493
        %v506 = vunpack.c.l.b16 %v494
        %v507 = vunpack.c.l.b16 %v495
        %v508 = vpack.c.b16 %v503, %v502
        %v509 = vpack.c.b16 %v505, %v504
        %v510 = vpack.c.b16 %v507, %v506
        %vm514 = vcmask 392192
        %v516 = vsel %vm514, %v489, 0
        %518 = vmatprep.subr.bf16.mxu0 0
        %519 = vmatpush1.bf16.msra.mxu0 %v508
        %520 = vmatprep.subr.bf16.mxu0 0
        %521 = vmatpush1.bf16.msra.mxu0 %v509
        %522 = vmatprep.subr.bf16.mxu0 0
        %523 = vmatpush1.bf16.msra.mxu0 %v510
        %524 = vmatprep.subr.bf16.mxu0 0
        %525 = vmatpush1.bf16.msra.mxu0 0
        %526 = vmatprep.subr.bf16.mxu0 0
        %527 = vmatpush1.bf16.msra.mxu0 0
        %528 = vmatprep.subr.bf16.mxu0 0
        %529 = vmatpush1.bf16.msra.mxu0 0
        %530 = vmatprep.subr.bf16.mxu0 0
        %531 = vmatpush1.bf16.msra.mxu0 0
        %532 = vmatprep.subr.bf16.mxu0 0
        %533 = vmatpush1.bf16.msra.mxu0 0
        %534 = vmatprep.subr.bf16.mxu0 0
        %535 = vmatpush1.bf16.msra.mxu0 0
        %536 = vmatprep.subr.bf16.mxu0 0
        %537 = vmatpush1.bf16.msra.mxu0 0
        %538 = vmatprep.subr.bf16.mxu0 0
        %539 = vmatpush1.bf16.msra.mxu0 0
        %540 = vmatprep.subr.bf16.mxu0 0
        %541 = vmatpush1.bf16.msra.mxu0 0
        %542 = vmatprep.subr.bf16.mxu0 0
        %543 = vmatpush1.bf16.msra.mxu0 0
        %544 = vmatprep.subr.bf16.mxu0 0
        %545 = vmatpush1.bf16.msra.mxu0 0
        %546 = vmatprep.subr.bf16.mxu0 0
        %547 = vmatpush1.bf16.msra.mxu0 0
        %548 = vmatprep.subr.bf16.mxu0 0
        %549 = vmatpush1.bf16.msra.mxu0 0
        %550 = vmatprep.mubr.bf16.mxu0 0
        %551 = vmatmul.mubr.bf16.gmra.mrb[0].mxu0 %v516
        %v552 = vpop.f32.mrb[0].mxu0
        %v553 = vadd.f32 0.0, %v552
        %v554 = vpop.f32.mrb[0].mxu0
        %v555 = vpop.f32.mrb[0].mxu0
        %v556 = vadd.f32 0.0, %v555
        %v557 = vpop.f32.mrb[0].mxu0
        %558 = vdwg.mxu0
        %v560 = vlaneseq
        %v561 = vshrl.u32 %v560, 7
        %v562 = vsub.s32 0, %v561
        %v563 = vrot.slane %v431, %v562
        %v565 = vmul.f32 %v553, %v563
        %v566 = vmul.f32 %v556, %v563
        %v568 = vlaneseq
        %v569 = vshrl.u32 %v568, 7
        %v570 = vsub.s32 0, %v569
        %v571 = vrot.slane %v432, %v570
        %v573 = vadd.f32 %v565, %v571
        %v574 = vadd.f32 %v566, %v571
        %vm575 = vcmp.gt.f32.partialorder %v573, 0.0
        %vm576 = vcmp.gt.f32.partialorder %v574, 0.0
        %v577 = vmul.f32 %v573, 0.1
        %v578 = vmul.f32 %v574, 0.1
        %v579 = vsel %vm575, %v573, %v577
        %v580 = vsel %vm576, %v574, %v578
        %v581 = vrot.slane %v579, 1
        %v582 = vrot.slane %v580, 1
        %v583 = vsel %vm467, %v581, %v582
        %v584 = vsel %vm467, %v582, %v581
        %v585 = vadd.f32 %v579, %v583
        %v586 = vadd.f32 %v580, %v584
        %vm587 = vcmask 523264
        %588 = vst.msk [vmem:[#allocation3] sm:$0xff] %vm587, %v585
        %589 = vst.msk [vmem:[#allocation3 + $0x8] sm:$0xff] %vm587, %v586
        %v590 = vld [vmem:[#allocation3] ss:$2 sm:$0xff]
        %v591 = vmul.f32 %v590, 0.5
        %v592 = vld [vmem:[%s5] sm:$0x1]
        %v593 = vld [vmem:[%s6] sm:$0x1]
        %v594 = vrot.slane %v591, 7
        %v595 = vsel %vm445, 0.0, %v594
        %596 = vst.msk [vmem:[#allocation4] sm:$0xff] %vm587, %v595
        %598 = vrot.lane.b32.xlu0 %v591, 64
        %v599 = vpop.permute.xlu0 %598
        %vm601 = vcmask 1048064
        %602 = vst.msk [vmem:[#allocation4] sm:$0xff] %vm601, %v599
        %vm603 = vcmp.eq.s32.totalorder %v434, 7
        %v604 = vrot.slane %v591, 1
        %v605 = vsel %vm603, 1, 0
        %vm606 = vcmp.eq.s32.totalorder %v605, 1
        %v607 = vsel %vm606, 0.0, %v604
        %608 = vst.msk [vmem:[#allocation4 + $0x8] sm:$0xff] %vm587, %v607
        %v609 = vld [vmem:[#allocation4] sm:$0xff]
        %v610 = vld [vmem:[#allocation4 + $0x8] sm:$0xff]
        %v611 = vpack.c.bf16 %v609, %v609
        %v612 = vpack.c.bf16 %v610, %v610
        %v613 = vld [vmem:[%s4] sm:$0xf]
        %v614 = vld [vmem:[%s4 + $0x4] sm:$0xf]
        %v615 = vld [vmem:[%s4 + $0x8] sm:$0xf]
        %v616 = vld [vmem:[%s4 + $0xc] sm:$0xf]
        %v617 = vld [vmem:[%s4 + $0x10] sm:$0xf]
        %v618 = vld [vmem:[%s4 + $0x14] sm:$0xf]
        %v619 = vld [vmem:[%s4 + $0x18] sm:$0xf]
        %v620 = vld [vmem:[%s4 + $0x1c] sm:$0xf]
        %v621 = vld [vmem:[%s4 + $0x20] sm:$0xf]
        %v622 = vld [vmem:[%s4 + $0x24] sm:$0xf]
        %v623 = vld [vmem:[%s4 + $0x28] sm:$0xf]
        %v624 = vld [vmem:[%s4 + $0x2c] sm:$0xf]
        %v625 = vld [vmem:[%s4 + $0x30] sm:$0xf]
        %v626 = vld [vmem:[%s4 + $0x34] sm:$0xf]
        %v627 = vld [vmem:[%s4 + $0x38] sm:$0xf]
        %v628 = vld [vmem:[%s4 + $0x3c] sm:$0xf]
        %v629 = vld [vmem:[%s4 + $0x40] sm:$0xf]
        %v630 = vld [vmem:[%s4 + $0x44] sm:$0xf]
        %v631 = vld [vmem:[%s4 + $0x48] sm:$0xf]
        %v632 = vld [vmem:[%s4 + $0x4c] sm:$0xf]
        %v633 = vld [vmem:[%s4 + $0x50] sm:$0xf]
        %v634 = vld [vmem:[%s4 + $0x54] sm:$0xf]
        %v635 = vld [vmem:[%s4 + $0x58] sm:$0xf]
        %v636 = vld [vmem:[%s4 + $0x5c] sm:$0xf]
        %v661 = vunpack.c.l.b16 %v613
        %v662 = vunpack.c.l.b16 %v614
        %v663 = vunpack.c.l.b16 %v615
        %v664 = vunpack.c.l.b16 %v616
        %v665 = vunpack.c.l.b16 %v617
        %v666 = vunpack.c.l.b16 %v618
        %v667 = vunpack.c.l.b16 %v619
        %v668 = vunpack.c.l.b16 %v620
        %v669 = vunpack.c.l.b16 %v621
        %v670 = vunpack.c.l.b16 %v622
        %v671 = vunpack.c.l.b16 %v623
        %v672 = vunpack.c.l.b16 %v624
        %v673 = vunpack.c.l.b16 %v625
        %v674 = vunpack.c.l.b16 %v626
        %v675 = vunpack.c.l.b16 %v627
        %v676 = vunpack.c.l.b16 %v628
        %v677 = vunpack.c.l.b16 %v629
        %v678 = vunpack.c.l.b16 %v630
        %v679 = vunpack.c.l.b16 %v631
        %v680 = vunpack.c.l.b16 %v632
        %v681 = vunpack.c.l.b16 %v633
        %v682 = vunpack.c.l.b16 %v634
        %v683 = vunpack.c.l.b16 %v635
        %v684 = vunpack.c.l.b16 %v636
        %v685 = vpack.c.b16 %v662, %v661
        %v686 = vpack.c.b16 %v664, %v663
        %v687 = vpack.c.b16 %v666, %v665
        %v688 = vpack.c.b16 %v668, %v667
        %v689 = vpack.c.b16 %v670, %v669
        %v690 = vpack.c.b16 %v672, %v671
        %v691 = vpack.c.b16 %v674, %v673
        %v692 = vpack.c.b16 %v676, %v675
        %v693 = vpack.c.b16 %v678, %v677
        %v694 = vpack.c.b16 %v680, %v679
        %v695 = vpack.c.b16 %v682, %v681
        %v696 = vpack.c.b16 %v684, %v683
        %v710 = vsel %vm587, %v612, 0
        %712 = vmatprep.subr.bf16.mxu0 0
        %713 = vmatpush1.bf16.msra.mxu0 %v685
        %714 = vmatprep.subr.bf16.mxu0 0
        %715 = vmatpush1.bf16.msra.mxu0 %v686
        %716 = vmatprep.subr.bf16.mxu0 0
        %717 = vmatpush1.bf16.msra.mxu0 %v687
        %718 = vmatprep.subr.bf16.mxu0 0
        %719 = vmatpush1.bf16.msra.mxu0 %v688
        %720 = vmatprep.subr.bf16.mxu0 0
        %721 = vmatpush1.bf16.msra.mxu0 %v689
        %722 = vmatprep.subr.bf16.mxu0 0
        %723 = vmatpush1.bf16.msra.mxu0 %v690
        %724 = vmatprep.subr.bf16.mxu0 0
        %725 = vmatpush1.bf16.msra.mxu0 %v691
        %726 = vmatprep.subr.bf16.mxu0 0
        %727 = vmatpush1.bf16.msra.mxu0 %v692
        %728 = vmatprep.subr.bf16.mxu0 0
        %729 = vmatpush1.bf16.msra.mxu0 %v693
        %730 = vmatprep.subr.bf16.mxu0 0
        %731 = vmatpush1.bf16.msra.mxu0 %v694
        %732 = vmatprep.subr.bf16.mxu0 0
        %733 = vmatpush1.bf16.msra.mxu0 %v695
        %734 = vmatprep.subr.bf16.mxu0 0
        %735 = vmatpush1.bf16.msra.mxu0 %v696
        %736 = vmatprep.subr.bf16.mxu0 0
        %737 = vmatpush1.bf16.msra.mxu0 0
        %738 = vmatprep.subr.bf16.mxu0 0
        %739 = vmatpush1.bf16.msra.mxu0 0
        %740 = vmatprep.subr.bf16.mxu0 0
        %741 = vmatpush1.bf16.msra.mxu0 0
        %742 = vmatprep.subr.bf16.mxu0 0
        %743 = vmatpush1.bf16.msra.mxu0 0
        %744 = vmatprep.mubr.bf16.mxu0 %v710
        %745 = vmatmul.mubr.bf16.gmra.mrb[0].mxu0 %v611
        %v746 = vpop.f32.mrb[0].mxu0
        %v747 = vadd.f32 0.0, %v746
        %v748 = vpop.f32.mrb[0].mxu0
        %v749 = vpop.f32.mrb[0].mxu0
        %v750 = vpop.f32.mrb[0].mxu0
        %751 = vdwg.mxu0
        %v753 = vlaneseq
        %v754 = vshrl.u32 %v753, 7
        %v755 = vsub.s32 0, %v754
        %v756 = vrot.slane %v592, %v755
        %v758 = vmul.f32 %v747, %v756
        %v760 = vlaneseq
        %v761 = vshrl.u32 %v760, 7
        %v762 = vsub.s32 0, %v761
        %v763 = vrot.slane %v593, %v762
        %v765 = vadd.f32 %v758, %v763
        %vm766 = vcmp.gt.f32.partialorder %v765, 0.0
        %v767 = vmul.f32 %v765, 0.1
        %v768 = vsel %vm766, %v765, %v767
        %v769 = vrot.slane %v768, 1
        %v770 = vadd.f32 %v768, %v769
        %771 = vst [vmem:[#allocation5] sm:$0xff] %v770
        %v772 = vld [vmem:[#allocation5] ss:$2 sm:$0xf]
        %v773 = vmul.f32 %v772, 0.5
        %v774 = vlaneseq
        %vm775 = vcmp.ge.s32.totalorder %v774, 0
        %vm776 = vcmp.lt.s32.totalorder %v774, 128
        %vm777 = vmand %vm775, %vm776
        %778 = vst.msk [vmem:[#allocation6] sm:$0x1] %vm777, %v773
        %v781 = vunpack.c.l.s4 1966171168
        %v782 = vunpack.c.0.s8 %v781
        %v783 = vlaneseq
        %v784 = vshrl.u32 %v783, 7
        %v785 = vsub.s32 %v782, %v784
        %v786 = vrot.slane %v773, %v785
        %v787 = vcombine.high %v786, %v786
        %v789 = vunpack.c.l.s4 1966171168
        %v790 = vunpack.c.0.s8 %v789
        %v791 = vlaneseq
        %v792 = vshrl.u32 %v791, 7
        %v793 = vsub.s32 %v790, %v792
        %v794 = vrot.slane %v786, %v793
        %v796 = vunpack.c.l.s4 1966171168
        %v797 = vunpack.c.0.s8 %v796
        %v798 = vlaneseq
        %v799 = vshrl.u32 %v798, 7
        %v800 = vsub.s32 %v797, %v799
        %v801 = vrot.slane %v787, %v800
        %803 = vst.msk [vmem:[#allocation6 + $0x1] sm:$0x1] %vm777, %v801
        %v804 = vcombine.high %v794, %v794
        %806 = vst.msk [vmem:[#allocation6 + $0x2] sm:$0x1] %vm777, %v804
        %v807 = vcombine.high %v801, %v801
        %809 = vst.msk [vmem:[#allocation6 + $0x3] sm:$0x1] %vm777, %v807
        %v810 = vld [vmem:[#allocation6] sm:$0xf]
        %v812 = vlaneseq
        %v813 = vshrl.u32 %v812, 7
        %v814 = vsub.s32 0, %v813
        %v815 = vrot.slane %v810, %v814
        %v816 = vlaneseq
        %v817 = vshrl.u32 %v816, 7
        %v818 = vsub.s32 1, %v817
        %v819 = vrot.slane %v810, %v818
        %v820 = vlaneseq
        %v821 = vshrl.u32 %v820, 7
        %v822 = vsub.s32 2, %v821
        %v823 = vrot.slane %v810, %v822
        %v824 = vlaneseq
        %v825 = vshrl.u32 %v824, 7
        %v826 = vsub.s32 3, %v825
        %v827 = vrot.slane %v810, %v826
        %v832 = vpack.c.bf16 %v815, %v815
        %v833 = vpack.c.bf16 %v819, %v819
        %v834 = vpack.c.bf16 %v823, %v823
        %v835 = vpack.c.bf16 %v827, %v827
        %v836 = vld [vmem:[#allocation10] sm:$0xff]
        %v837 = vld [vmem:[#allocation10 + $0x8] sm:$0xff]
        %v838 = vld [vmem:[#allocation10 + $0x10] sm:$0xff]
        %v839 = vld [vmem:[#allocation10 + $0x18] sm:$0xff]
        %v840 = vld [vmem:[#allocation10 + $0x20] sm:$0xff]
        %v841 = vld [vmem:[#allocation10 + $0x28] sm:$0xff]
        %v842 = vld [vmem:[#allocation10 + $0x30] sm:$0xff]
        %v843 = vld [vmem:[#allocation10 + $0x38] sm:$0xff]
        %v844 = vld [vmem:[#allocation10 + $0x40] sm:$0xff]
        %v845 = vld [vmem:[#allocation10 + $0x48] sm:$0xff]
        %v846 = vld [vmem:[#allocation10 + $0x50] sm:$0xff]
        %v847 = vld [vmem:[#allocation10 + $0x58] sm:$0xff]
        %v848 = vld [vmem:[#allocation10 + $0x60] sm:$0xff]
        %v849 = vld [vmem:[#allocation10 + $0x68] sm:$0xff]
        %v850 = vld [vmem:[#allocation10 + $0x70] sm:$0xff]
        %v851 = vld [vmem:[#allocation10 + $0x78] sm:$0xff]
        %v852 = vld [vmem:[#allocation10 + $0x80] sm:$0xff]
        %v853 = vld [vmem:[#allocation10 + $0x88] sm:$0xff]
        %v854 = vld [vmem:[#allocation10 + $0x90] sm:$0xff]
        %v855 = vld [vmem:[#allocation10 + $0x98] sm:$0xff]
        %v856 = vld [vmem:[#allocation10 + $0xa0] sm:$0xff]
        %v857 = vld [vmem:[#allocation10 + $0xa8] sm:$0xff]
        %v858 = vld [vmem:[#allocation10 + $0xb0] sm:$0xff]
        %v859 = vld [vmem:[#allocation10 + $0xb8] sm:$0xff]
        %v860 = vld [vmem:[#allocation10 + $0xc0] sm:$0xff]
        %v861 = vld [vmem:[#allocation10 + $0xc8] sm:$0xff]
        %v862 = vld [vmem:[#allocation10 + $0xd0] sm:$0xff]
        %v863 = vld [vmem:[#allocation10 + $0xd8] sm:$0xff]
        %v864 = vld [vmem:[#allocation10 + $0xe0] sm:$0xff]
        %v865 = vld [vmem:[#allocation10 + $0xe8] sm:$0xff]
        %v866 = vld [vmem:[#allocation10 + $0xf0] sm:$0xff]
        %v867 = vld [vmem:[#allocation10 + $0xf8] sm:$0xff]
        %v868 = vld [vmem:[#allocation10 + $0x100] sm:$0xff]
        %v869 = vld [vmem:[#allocation10 + $0x108] sm:$0xff]
        %v870 = vld [vmem:[#allocation10 + $0x110] sm:$0xff]
        %v871 = vld [vmem:[#allocation10 + $0x118] sm:$0xff]
        %v872 = vld [vmem:[#allocation10 + $0x120] sm:$0xff]
        %v873 = vld [vmem:[#allocation10 + $0x128] sm:$0xff]
        %v874 = vld [vmem:[#allocation10 + $0x130] sm:$0xff]
        %v875 = vld [vmem:[#allocation10 + $0x138] sm:$0xff]
        %v876 = vld [vmem:[#allocation10 + $0x140] sm:$0xff]
        %v877 = vld [vmem:[#allocation10 + $0x148] sm:$0xff]
        %v878 = vld [vmem:[#allocation10 + $0x150] sm:$0xff]
        %v879 = vld [vmem:[#allocation10 + $0x158] sm:$0xff]
        %v880 = vld [vmem:[#allocation10 + $0x160] sm:$0xff]
        %v881 = vld [vmem:[#allocation10 + $0x168] sm:$0xff]
        %v882 = vld [vmem:[#allocation10 + $0x170] sm:$0xff]
        %v883 = vld [vmem:[#allocation10 + $0x178] sm:$0xff]
        %v884 = vld [vmem:[#allocation10 + $0x180] sm:$0xff]
        %v885 = vld [vmem:[#allocation10 + $0x188] sm:$0xff]
        %v886 = vld [vmem:[#allocation10 + $0x190] sm:$0xff]
        %v887 = vld [vmem:[#allocation10 + $0x198] sm:$0xff]
        %v888 = vld [vmem:[#allocation10 + $0x1a0] sm:$0xff]
        %v889 = vld [vmem:[#allocation10 + $0x1a8] sm:$0xff]
        %v890 = vld [vmem:[#allocation10 + $0x1b0] sm:$0xff]
        %v891 = vld [vmem:[#allocation10 + $0x1b8] sm:$0xff]
        %v892 = vld [vmem:[#allocation10 + $0x1c0] sm:$0xff]
        %v893 = vld [vmem:[#allocation10 + $0x1c8] sm:$0xff]
        %v894 = vld [vmem:[#allocation10 + $0x1d0] sm:$0xff]
        %v895 = vld [vmem:[#allocation10 + $0x1d8] sm:$0xff]
        %v896 = vld [vmem:[#allocation10 + $0x1e0] sm:$0xff]
        %v897 = vld [vmem:[#allocation10 + $0x1e8] sm:$0xff]
        %v898 = vld [vmem:[#allocation10 + $0x1f0] sm:$0xff]
        %v899 = vld [vmem:[#allocation10 + $0x1f8] sm:$0xff]
        %v900 = vld [vmem:[%s8] sm:$0x3]
        %v965 = vunpack.c.l.b16 %v836
        %v966 = vunpack.c.h.b16 %v836
        %v967 = vunpack.c.l.b16 %v837
        %v968 = vunpack.c.h.b16 %v837
        %v969 = vunpack.c.l.b16 %v838
        %v970 = vunpack.c.h.b16 %v838
        %v971 = vunpack.c.l.b16 %v839
        %v972 = vunpack.c.h.b16 %v839
        %v973 = vunpack.c.l.b16 %v840
        %v974 = vunpack.c.h.b16 %v840
        %v975 = vunpack.c.l.b16 %v841
        %v976 = vunpack.c.h.b16 %v841
        %v977 = vunpack.c.l.b16 %v842
        %v978 = vunpack.c.h.b16 %v842
        %v979 = vunpack.c.l.b16 %v843
        %v980 = vunpack.c.h.b16 %v843
        %v981 = vunpack.c.l.b16 %v844
        %v982 = vunpack.c.h.b16 %v844
        %v983 = vunpack.c.l.b16 %v845
        %v984 = vunpack.c.h.b16 %v845
        %v985 = vunpack.c.l.b16 %v846
        %v986 = vunpack.c.h.b16 %v846
        %v987 = vunpack.c.l.b16 %v847
        %v988 = vunpack.c.h.b16 %v847
        %v989 = vunpack.c.l.b16 %v848
        %v990 = vunpack.c.h.b16 %v848
        %v991 = vunpack.c.l.b16 %v849
        %v992 = vunpack.c.h.b16 %v849
        %v993 = vunpack.c.l.b16 %v850
        %v994 = vunpack.c.h.b16 %v850
        %v995 = vunpack.c.l.b16 %v851
        %v996 = vunpack.c.h.b16 %v851
        %v997 = vunpack.c.l.b16 %v852
        %v998 = vunpack.c.h.b16 %v852
        %v999 = vunpack.c.l.b16 %v853
        %v1000 = vunpack.c.h.b16 %v853
        %v1001 = vunpack.c.l.b16 %v854
        %v1002 = vunpack.c.h.b16 %v854
        %v1003 = vunpack.c.l.b16 %v855
        %v1004 = vunpack.c.h.b16 %v855
        %v1005 = vunpack.c.l.b16 %v856
        %v1006 = vunpack.c.h.b16 %v856
        %v1007 = vunpack.c.l.b16 %v857
        %v1008 = vunpack.c.h.b16 %v857
        %v1009 = vunpack.c.l.b16 %v858
        %v1010 = vunpack.c.h.b16 %v858
        %v1011 = vunpack.c.l.b16 %v859
        %v1012 = vunpack.c.h.b16 %v859
        %v1013 = vunpack.c.l.b16 %v860
        %v1014 = vunpack.c.h.b16 %v860
        %v1015 = vunpack.c.l.b16 %v861
        %v1016 = vunpack.c.h.b16 %v861
        %v1017 = vunpack.c.l.b16 %v862
        %v1018 = vunpack.c.h.b16 %v862
        %v1019 = vunpack.c.l.b16 %v863
        %v1020 = vunpack.c.h.b16 %v863
        %v1021 = vunpack.c.l.b16 %v864
        %v1022 = vunpack.c.h.b16 %v864
        %v1023 = vunpack.c.l.b16 %v865
        %v1024 = vunpack.c.h.b16 %v865
        %v1025 = vunpack.c.l.b16 %v866
        %v1026 = vunpack.c.h.b16 %v866
        %v1027 = vunpack.c.l.b16 %v867
        %v1028 = vunpack.c.h.b16 %v867
        %v1029 = vunpack.c.l.b16 %v868
        %v1030 = vunpack.c.h.b16 %v868
        %v1031 = vunpack.c.l.b16 %v869
        %v1032 = vunpack.c.h.b16 %v869
        %v1033 = vunpack.c.l.b16 %v870
        %v1034 = vunpack.c.h.b16 %v870
        %v1035 = vunpack.c.l.b16 %v871
        %v1036 = vunpack.c.h.b16 %v871
        %v1037 = vunpack.c.l.b16 %v872
        %v1038 = vunpack.c.h.b16 %v872
        %v1039 = vunpack.c.l.b16 %v873
        %v1040 = vunpack.c.h.b16 %v873
        %v1041 = vunpack.c.l.b16 %v874
        %v1042 = vunpack.c.h.b16 %v874
        %v1043 = vunpack.c.l.b16 %v875
        %v1044 = vunpack.c.h.b16 %v875
        %v1045 = vunpack.c.l.b16 %v876
        %v1046 = vunpack.c.h.b16 %v876
        %v1047 = vunpack.c.l.b16 %v877
        %v1048 = vunpack.c.h.b16 %v877
        %v1049 = vunpack.c.l.b16 %v878
        %v1050 = vunpack.c.h.b16 %v878
        %v1051 = vunpack.c.l.b16 %v879
        %v1052 = vunpack.c.h.b16 %v879
        %v1053 = vunpack.c.l.b16 %v880
        %v1054 = vunpack.c.h.b16 %v880
        %v1055 = vunpack.c.l.b16 %v881
        %v1056 = vunpack.c.h.b16 %v881
        %v1057 = vunpack.c.l.b16 %v882
        %v1058 = vunpack.c.h.b16 %v882
        %v1059 = vunpack.c.l.b16 %v883
        %v1060 = vunpack.c.h.b16 %v883
        %v1061 = vunpack.c.l.b16 %v884
        %v1062 = vunpack.c.h.b16 %v884
        %v1063 = vunpack.c.l.b16 %v885
        %v1064 = vunpack.c.h.b16 %v885
        %v1065 = vunpack.c.l.b16 %v886
        %v1066 = vunpack.c.h.b16 %v886
        %v1067 = vunpack.c.l.b16 %v887
        %v1068 = vunpack.c.h.b16 %v887
        %v1069 = vunpack.c.l.b16 %v888
        %v1070 = vunpack.c.h.b16 %v888
        %v1071 = vunpack.c.l.b16 %v889
        %v1072 = vunpack.c.h.b16 %v889
        %v1073 = vunpack.c.l.b16 %v890
        %v1074 = vunpack.c.h.b16 %v890
        %v1075 = vunpack.c.l.b16 %v891
        %v1076 = vunpack.c.h.b16 %v891
        %v1077 = vunpack.c.l.b16 %v892
        %v1078 = vunpack.c.h.b16 %v892
        %v1079 = vunpack.c.l.b16 %v893
        %v1080 = vunpack.c.h.b16 %v893
        %v1081 = vunpack.c.l.b16 %v894
        %v1082 = vunpack.c.h.b16 %v894
        %v1083 = vunpack.c.l.b16 %v895
        %v1084 = vunpack.c.h.b16 %v895
        %v1085 = vunpack.c.l.b16 %v896
        %v1086 = vunpack.c.h.b16 %v896
        %v1087 = vunpack.c.l.b16 %v897
        %v1088 = vunpack.c.h.b16 %v897
        %v1089 = vunpack.c.l.b16 %v898
        %v1090 = vunpack.c.h.b16 %v898
        %v1091 = vunpack.c.l.b16 %v899
        %v1092 = vunpack.c.h.b16 %v899
        %v1093 = vpack.c.b16 %v967, %v965
        %v1094 = vpack.c.b16 %v968, %v966
        %v1095 = vpack.c.b16 %v971, %v969
        %v1096 = vpack.c.b16 %v972, %v970
        %v1097 = vpack.c.b16 %v975, %v973
        %v1098 = vpack.c.b16 %v976, %v974
        %v1099 = vpack.c.b16 %v979, %v977
        %v1100 = vpack.c.b16 %v980, %v978
        %v1101 = vpack.c.b16 %v983, %v981
        %v1102 = vpack.c.b16 %v984, %v982
        %v1103 = vpack.c.b16 %v987, %v985
        %v1104 = vpack.c.b16 %v988, %v986
        %v1105 = vpack.c.b16 %v991, %v989
        %v1106 = vpack.c.b16 %v992, %v990
        %v1107 = vpack.c.b16 %v995, %v993
        %v1108 = vpack.c.b16 %v996, %v994
        %v1109 = vpack.c.b16 %v999, %v997
        %v1110 = vpack.c.b16 %v1000, %v998
        %v1111 = vpack.c.b16 %v1003, %v1001
        %v1112 = vpack.c.b16 %v1004, %v1002
        %v1113 = vpack.c.b16 %v1007, %v1005
        %v1114 = vpack.c.b16 %v1008, %v1006
        %v1115 = vpack.c.b16 %v1011, %v1009
        %v1116 = vpack.c.b16 %v1012, %v1010
        %v1117 = vpack.c.b16 %v1015, %v1013
        %v1118 = vpack.c.b16 %v1016, %v1014
        %v1119 = vpack.c.b16 %v1019, %v1017
        %v1120 = vpack.c.b16 %v1020, %v1018
        %v1121 = vpack.c.b16 %v1023, %v1021
        %v1122 = vpack.c.b16 %v1024, %v1022
        %v1123 = vpack.c.b16 %v1027, %v1025
        %v1124 = vpack.c.b16 %v1028, %v1026
        %v1125 = vpack.c.b16 %v1031, %v1029
        %v1126 = vpack.c.b16 %v1032, %v1030
        %v1127 = vpack.c.b16 %v1035, %v1033
        %v1128 = vpack.c.b16 %v1036, %v1034
        %v1129 = vpack.c.b16 %v1039, %v1037
        %v1130 = vpack.c.b16 %v1040, %v1038
        %v1131 = vpack.c.b16 %v1043, %v1041
        %v1132 = vpack.c.b16 %v1044, %v1042
        %v1133 = vpack.c.b16 %v1047, %v1045
        %v1134 = vpack.c.b16 %v1048, %v1046
        %v1135 = vpack.c.b16 %v1051, %v1049
        %v1136 = vpack.c.b16 %v1052, %v1050
        %v1137 = vpack.c.b16 %v1055, %v1053
        %v1138 = vpack.c.b16 %v1056, %v1054
        %v1139 = vpack.c.b16 %v1059, %v1057
        %v1140 = vpack.c.b16 %v1060, %v1058
        %v1141 = vpack.c.b16 %v1063, %v1061
        %v1142 = vpack.c.b16 %v1064, %v1062
        %v1143 = vpack.c.b16 %v1067, %v1065
        %v1144 = vpack.c.b16 %v1068, %v1066
        %v1145 = vpack.c.b16 %v1071, %v1069
        %v1146 = vpack.c.b16 %v1072, %v1070
        %v1147 = vpack.c.b16 %v1075, %v1073
        %v1148 = vpack.c.b16 %v1076, %v1074
        %v1149 = vpack.c.b16 %v1079, %v1077
        %v1150 = vpack.c.b16 %v1080, %v1078
        %v1151 = vpack.c.b16 %v1083, %v1081
        %v1152 = vpack.c.b16 %v1084, %v1082
        %v1153 = vpack.c.b16 %v1087, %v1085
        %v1154 = vpack.c.b16 %v1088, %v1086
        %v1155 = vpack.c.b16 %v1091, %v1089
        %v1156 = vpack.c.b16 %v1092, %v1090
        %v1222 = vlaneseq
        %v1223 = vshrl.u32 %v1222, 7
        %v1224 = vsub.s32 0, %v1223
        %v1225 = vrot.slane %v900, %v1224
        %v1226 = vlaneseq
        %v1227 = vshrl.u32 %v1226, 7
        %v1228 = vsub.s32 1, %v1227
        %v1229 = vrot.slane %v900, %v1228
        %1232 = vmatprep.subr.bf16.mxu0 %v1094
        %1233 = vmatpush1.bf16.msra.mxu0 %v1093
        %1234 = vmatprep.subr.bf16.mxu0 %v1096
        %1235 = vmatpush1.bf16.msra.mxu0 %v1095
        %1236 = vmatprep.subr.bf16.mxu0 %v1098
        %1237 = vmatpush1.bf16.msra.mxu0 %v1097
        %1238 = vmatprep.subr.bf16.mxu0 %v1100
        %1239 = vmatpush1.bf16.msra.mxu0 %v1099
        %1240 = vmatprep.subr.bf16.mxu0 %v1102
        %1241 = vmatpush1.bf16.msra.mxu0 %v1101
        %1242 = vmatprep.subr.bf16.mxu0 %v1104
        %1243 = vmatpush1.bf16.msra.mxu0 %v1103
        %1244 = vmatprep.subr.bf16.mxu0 %v1106
        %1245 = vmatpush1.bf16.msra.mxu0 %v1105
        %1246 = vmatprep.subr.bf16.mxu0 %v1108
        %1247 = vmatpush1.bf16.msra.mxu0 %v1107
        %1248 = vmatprep.subr.bf16.mxu0 %v1110
        %1249 = vmatpush1.bf16.msra.mxu0 %v1109
        %1250 = vmatprep.subr.bf16.mxu0 %v1112
        %1251 = vmatpush1.bf16.msra.mxu0 %v1111
        %1252 = vmatprep.subr.bf16.mxu0 %v1114
        %1253 = vmatpush1.bf16.msra.mxu0 %v1113
        %1254 = vmatprep.subr.bf16.mxu0 %v1116
        %1255 = vmatpush1.bf16.msra.mxu0 %v1115
        %1256 = vmatprep.subr.bf16.mxu0 %v1118
        %1257 = vmatpush1.bf16.msra.mxu0 %v1117
        %1258 = vmatprep.subr.bf16.mxu0 %v1120
        %1259 = vmatpush1.bf16.msra.mxu0 %v1119
        %1260 = vmatprep.subr.bf16.mxu0 %v1122
        %1261 = vmatpush1.bf16.msra.mxu0 %v1121
        %1262 = vmatprep.subr.bf16.mxu0 %v1124
        %1263 = vmatpush1.bf16.msra.mxu0 %v1123
        %1264 = vmatprep.mubr.bf16.mxu0 %v833
        %1265 = vmatmul.mubr.bf16.gmra.mrb[0].mxu0 %v832
        %v1266 = vpop.f32.mrb[0].mxu0
        %v1267 = vadd.f32 %v1225, %v1266
        %v1268 = vpop.f32.mrb[0].mxu0
        %v1269 = vadd.f32 %v1229, %v1268
        %v1270 = vpop.f32.mrb[0].mxu0
        %v1271 = vpop.f32.mrb[0].mxu0
        %1272 = vdwg.mxu0
        %1273 = vmatprep.subr.bf16.mxu0 %v1126
        %1274 = vmatpush1.bf16.msra.mxu0 %v1125
        %1275 = vmatprep.subr.bf16.mxu0 %v1128
        %1276 = vmatpush1.bf16.msra.mxu0 %v1127
        %1277 = vmatprep.subr.bf16.mxu0 %v1130
        %1278 = vmatpush1.bf16.msra.mxu0 %v1129
        %1279 = vmatprep.subr.bf16.mxu0 %v1132
        %1280 = vmatpush1.bf16.msra.mxu0 %v1131
        %1281 = vmatprep.subr.bf16.mxu0 %v1134
        %1282 = vmatpush1.bf16.msra.mxu0 %v1133
        %1283 = vmatprep.subr.bf16.mxu0 %v1136
        %1284 = vmatpush1.bf16.msra.mxu0 %v1135
        %1285 = vmatprep.subr.bf16.mxu0 %v1138
        %1286 = vmatpush1.bf16.msra.mxu0 %v1137
        %1287 = vmatprep.subr.bf16.mxu0 %v1140
        %1288 = vmatpush1.bf16.msra.mxu0 %v1139
        %1289 = vmatprep.subr.bf16.mxu0 %v1142
        %1290 = vmatpush1.bf16.msra.mxu0 %v1141
        %1291 = vmatprep.subr.bf16.mxu0 %v1144
        %1292 = vmatpush1.bf16.msra.mxu0 %v1143
        %1293 = vmatprep.subr.bf16.mxu0 %v1146
        %1294 = vmatpush1.bf16.msra.mxu0 %v1145
        %1295 = vmatprep.subr.bf16.mxu0 %v1148
        %1296 = vmatpush1.bf16.msra.mxu0 %v1147
        %1297 = vmatprep.subr.bf16.mxu0 %v1150
        %1298 = vmatpush1.bf16.msra.mxu0 %v1149
        %1299 = vmatprep.subr.bf16.mxu0 %v1152
        %1300 = vmatpush1.bf16.msra.mxu0 %v1151
        %1301 = vmatprep.subr.bf16.mxu0 %v1154
        %1302 = vmatpush1.bf16.msra.mxu0 %v1153
        %1303 = vmatprep.subr.bf16.mxu0 %v1156
        %1304 = vmatpush1.bf16.msra.mxu0 %v1155
        %1305 = vmatprep.mubr.bf16.mxu0 %v835
        %1306 = vmatmul.mubr.bf16.gmra.mrb[0].mxu0 %v834
        %v1307 = vpop.f32.mrb[0].mxu0
        %v1308 = vadd.f32 %v1267, %v1307
        %v1309 = vpop.f32.mrb[0].mxu0
        %v1310 = vadd.f32 %v1269, %v1309
        %v1311 = vpop.f32.mrb[0].mxu0
        %v1312 = vpop.f32.mrb[0].mxu0
        %1313 = vdwg.mxu0
        %vm1314 = vcmp.gt.f32.partialorder %v1308, 0.0
        %vm1315 = vcmp.gt.f32.partialorder %v1310, 0.0
        %v1316 = vmul.f32 %v1308, 0.1
        %v1317 = vmul.f32 %v1310, 0.1
        %v1318 = vsel %vm1314, %v1308, %v1316
        %v1319 = vsel %vm1315, %v1310, %v1317
        %v1320 = vpack.c.bf16 %v1318, %v1318
        %v1321 = vpack.c.bf16 %v1319, %v1319
        %v1322 = vld [vmem:[#allocation12] sm:$0xf]
        %v1323 = vld [vmem:[#allocation12 + $0x4] sm:$0xf]
        %v1324 = vld [vmem:[#allocation12 + $0x8] sm:$0xf]
        %v1325 = vld [vmem:[#allocation12 + $0xc] sm:$0xf]
        %v1326 = vld [vmem:[#allocation12 + $0x10] sm:$0xf]
        %v1327 = vld [vmem:[#allocation12 + $0x14] sm:$0xf]
        %v1328 = vld [vmem:[#allocation12 + $0x18] sm:$0xf]
        %v1329 = vld [vmem:[#allocation12 + $0x1c] sm:$0xf]
        %v1330 = vld [vmem:[#allocation12 + $0x20] sm:$0xf]
        %v1331 = vld [vmem:[#allocation12 + $0x24] sm:$0xf]
        %v1332 = vld [vmem:[#allocation12 + $0x28] sm:$0xf]
        %v1333 = vld [vmem:[#allocation12 + $0x2c] sm:$0xf]
        %v1334 = vld [vmem:[#allocation12 + $0x30] sm:$0xf]
        %v1335 = vld [vmem:[#allocation12 + $0x34] sm:$0xf]
        %v1336 = vld [vmem:[#allocation12 + $0x38] sm:$0xf]
        %v1337 = vld [vmem:[#allocation12 + $0x3c] sm:$0xf]
        %v1338 = vld [vmem:[#allocation12 + $0x40] sm:$0xf]
        %v1339 = vld [vmem:[#allocation12 + $0x44] sm:$0xf]
        %v1340 = vld [vmem:[#allocation12 + $0x48] sm:$0xf]
        %v1341 = vld [vmem:[#allocation12 + $0x4c] sm:$0xf]
        %v1342 = vld [vmem:[#allocation12 + $0x50] sm:$0xf]
        %v1343 = vld [vmem:[#allocation12 + $0x54] sm:$0xf]
        %v1344 = vld [vmem:[#allocation12 + $0x58] sm:$0xf]
        %v1345 = vld [vmem:[#allocation12 + $0x5c] sm:$0xf]
        %v1346 = vld [vmem:[#allocation12 + $0x60] sm:$0xf]
        %v1347 = vld [vmem:[#allocation12 + $0x64] sm:$0xf]
        %v1348 = vld [vmem:[#allocation12 + $0x68] sm:$0xf]
        %v1349 = vld [vmem:[#allocation12 + $0x6c] sm:$0xf]
        %v1350 = vld [vmem:[#allocation12 + $0x70] sm:$0xf]
        %v1351 = vld [vmem:[#allocation12 + $0x74] sm:$0xf]
        %v1352 = vld [vmem:[#allocation12 + $0x78] sm:$0xf]
        %v1353 = vld [vmem:[#allocation12 + $0x7c] sm:$0xf]
        %v1354 = vld [vmem:[%s10] sm:$0x1]
        %v1387 = vunpack.c.l.b16 %v1322
        %v1388 = vunpack.c.l.b16 %v1323
        %v1389 = vunpack.c.l.b16 %v1324
        %v1390 = vunpack.c.l.b16 %v1325
        %v1391 = vunpack.c.l.b16 %v1326
        %v1392 = vunpack.c.l.b16 %v1327
        %v1393 = vunpack.c.l.b16 %v1328
        %v1394 = vunpack.c.l.b16 %v1329
        %v1395 = vunpack.c.l.b16 %v1330
        %v1396 = vunpack.c.l.b16 %v1331
        %v1397 = vunpack.c.l.b16 %v1332
        %v1398 = vunpack.c.l.b16 %v1333
        %v1399 = vunpack.c.l.b16 %v1334
        %v1400 = vunpack.c.l.b16 %v1335
        %v1401 = vunpack.c.l.b16 %v1336
        %v1402 = vunpack.c.l.b16 %v1337
        %v1403 = vunpack.c.l.b16 %v1338
        %v1404 = vunpack.c.l.b16 %v1339
        %v1405 = vunpack.c.l.b16 %v1340
        %v1406 = vunpack.c.l.b16 %v1341
        %v1407 = vunpack.c.l.b16 %v1342
        %v1408 = vunpack.c.l.b16 %v1343
        %v1409 = vunpack.c.l.b16 %v1344
        %v1410 = vunpack.c.l.b16 %v1345
        %v1411 = vunpack.c.l.b16 %v1346
        %v1412 = vunpack.c.l.b16 %v1347
        %v1413 = vunpack.c.l.b16 %v1348
        %v1414 = vunpack.c.l.b16 %v1349
        %v1415 = vunpack.c.l.b16 %v1350
        %v1416 = vunpack.c.l.b16 %v1351
        %v1417 = vunpack.c.l.b16 %v1352
        %v1418 = vunpack.c.l.b16 %v1353
        %v1419 = vpack.c.b16 %v1388, %v1387
        %v1420 = vpack.c.b16 %v1390, %v1389
        %v1421 = vpack.c.b16 %v1392, %v1391
        %v1422 = vpack.c.b16 %v1394, %v1393
        %v1423 = vpack.c.b16 %v1396, %v1395
        %v1424 = vpack.c.b16 %v1398, %v1397
        %v1425 = vpack.c.b16 %v1400, %v1399
        %v1426 = vpack.c.b16 %v1402, %v1401
        %v1427 = vpack.c.b16 %v1404, %v1403
        %v1428 = vpack.c.b16 %v1406, %v1405
        %v1429 = vpack.c.b16 %v1408, %v1407
        %v1430 = vpack.c.b16 %v1410, %v1409
        %v1431 = vpack.c.b16 %v1412, %v1411
        %v1432 = vpack.c.b16 %v1414, %v1413
        %v1433 = vpack.c.b16 %v1416, %v1415
        %v1434 = vpack.c.b16 %v1418, %v1417
        %1451 = vmatprep.subr.bf16.mxu0 0
        %1452 = vmatpush1.bf16.msra.mxu0 %v1419
        %1453 = vmatprep.subr.bf16.mxu0 0
        %1454 = vmatpush1.bf16.msra.mxu0 %v1420
        %1455 = vmatprep.subr.bf16.mxu0 0
        %1456 = vmatpush1.bf16.msra.mxu0 %v1421
        %1457 = vmatprep.subr.bf16.mxu0 0
        %1458 = vmatpush1.bf16.msra.mxu0 %v1422
        %1459 = vmatprep.subr.bf16.mxu0 0
        %1460 = vmatpush1.bf16.msra.mxu0 %v1423
        %1461 = vmatprep.subr.bf16.mxu0 0
        %1462 = vmatpush1.bf16.msra.mxu0 %v1424
        %1463 = vmatprep.subr.bf16.mxu0 0
        %1464 = vmatpush1.bf16.msra.mxu0 %v1425
        %1465 = vmatprep.subr.bf16.mxu0 0
        %1466 = vmatpush1.bf16.msra.mxu0 %v1426
        %1467 = vmatprep.subr.bf16.mxu0 0
        %1468 = vmatpush1.bf16.msra.mxu0 %v1427
        %1469 = vmatprep.subr.bf16.mxu0 0
        %1470 = vmatpush1.bf16.msra.mxu0 %v1428
        %1471 = vmatprep.subr.bf16.mxu0 0
        %1472 = vmatpush1.bf16.msra.mxu0 %v1429
        %1473 = vmatprep.subr.bf16.mxu0 0
        %1474 = vmatpush1.bf16.msra.mxu0 %v1430
        %1475 = vmatprep.subr.bf16.mxu0 0
        %1476 = vmatpush1.bf16.msra.mxu0 %v1431
        %1477 = vmatprep.subr.bf16.mxu0 0
        %1478 = vmatpush1.bf16.msra.mxu0 %v1432
        %1479 = vmatprep.subr.bf16.mxu0 0
        %1480 = vmatpush1.bf16.msra.mxu0 %v1433
        %1481 = vmatprep.subr.bf16.mxu0 0
        %1482 = vmatpush1.bf16.msra.mxu0 %v1434
        %1483 = vmatprep.mubr.bf16.mxu0 %v1321
        %1484 = vmatmul.mubr.bf16.gmra.mrb[0].mxu0 %v1320
        %v1485 = vpop.f32.mrb[0].mxu0
        %v1486 = vadd.f32 %v1354, %v1485
        %v1487 = vpop.f32.mrb[0].mxu0
        %v1488 = vpop.f32.mrb[0].mxu0
        %v1489 = vpop.f32.mrb[0].mxu0
        %1490 = vdwg.mxu0
        %1491 = vst [vmem:[%s422] sm:$0x1] %v1486
        %s1492 = sand.u32 %s271, 1
        %s1493 = scalar_lea.sflag [#allocation9], %s1492
        %s1494 = sand.u32 %s271, 1
        %s1495 = scalar_lea.vmem [#allocation13], %s1494
        // Predicated region
        $region77: #{var_cnn_forward.1} parent=63 // pred_check
          %p1496 = pneg %p281
        $region78: #{var_cnn_forward.1} parent=63 // pred_check_branch
          %1498 = sbr.rel (%p1496) target = $region80
        $region79: #{var_cnn_forward.1} parent=63 // pred_region
          %s1500 = ssub.s32 16, 16
          %1501 = vsyncadd %s1493, %s1500
          %s1502 = smul.addr %s27, 16
          %s1503 = scalar_lea.hbm %s11, %s1502
          %s1505 = sshll.u32 %s1495, 4
          %s1506 = int_to_ptr.vmem [resolvable:$true] %s1505
          %1508 = dma.vmem_to_hbm [thread:$0]  %s1506, 16, %s1503, %s1493
        $region80: #{var_cnn_forward.1} parent=63 // pred_fallthru
          _
      $region64: #{var_cnn_forward.1} parent=5 // pred_fallthru
        _
      %p1509 = scmp.le.s32.totalorder 2, %s22
      // Predicated region
      $region81: #{var_cnn_forward.1} parent=5 // pred_check
        %p1510 = pneg %p1509
      $region82: #{var_cnn_forward.1} parent=5 // pred_check_branch
        %1512 = sbr.rel (%p1510) target = $region84
      $region83: #{var_cnn_forward.1} parent=5 // pred_region
        %s1513 = ssub.s32 %s22, 2
        // Predicated region
        $region85: #{var_cnn_forward.1} parent=83 // pred_check
          %p1514 = pneg %p287
        $region86: #{var_cnn_forward.1} parent=83 // pred_check_branch
          %1516 = sbr.rel (%p1514) target = $region88
        $region87: #{var_cnn_forward.1} parent=83 // pred_region
          %s1517 = sand.u32 %s272, 1
          %s1518 = scalar_lea.sflag [#allocation9], %s1517
          %s1519 = sand.u32 %s272, 1
          %s1520 = scalar_lea.vmem [#allocation13], %s1519
          %1521 = dma.done %s1518, 16
        $region88: #{var_cnn_forward.1} parent=83 // pred_fallthru
          _
      $region84: #{var_cnn_forward.1} parent=5 // pred_fallthru
        _
    $region6: #{var_cnn_forward.1} parent=1 // loop_footer
      %s26 = sadd.s32 1, %s22
    $region7: #{var_cnn_forward.1} parent=1 // loop_footer_branch
      %21 = sbr.rel target = $region3
    $region8: #{var_cnn_forward.1} parent=1 // loop_exit
      _
    %1522 = vsyncpa [#allocation8], 1
    %s1523 = scalar_lea.sflag [#allocation8], 1
    %1524 = vsyncpa %s1523, 1
    %1525 = vsyncpa [#allocation11], 1
    %1526 = vsyncpa [#allocation9], 1
    %s1527 = scalar_lea.sflag [#allocation9], 1
    %1528 = vsyncpa %s1527, 1

</llo_original>
